<compile_context>
chip_gen: v7x
topology: tpu7x:2x2x1
jax: 0.10.0
libtpu: 0.0.40
codegen_flags: <defaults>
</compile_context>

<pallas_src>
import jax
import jax.numpy as jnp
from jax.experimental import pallas as pl
from jax.experimental.pallas import tpu as pltpu

STATE_DIM = 24
ACTION_DIM = 2
H1 = 800
H2 = 600

# Static padded sizes.
SP = 32     # state dim padded 24 -> 32 (full-array last dim, sublane friendly)
H1P = 896   # 800 -> multiple of 128
H2P = 640   # 600 -> multiple of 128
AP = 128    # action dim padded to one full lane register -> lane-dense output


def _round_up(x, m):
    return ((x + m - 1) // m) * m


def _actor_kernel(s_ref, w1_ref, b1_ref, w2_ref, b2_ref, w3_ref, b3_ref, o_ref):
    # layer 1: linear + relu (bf16 operands, f32 accumulation on the MXU)
    x = s_ref[...].astype(jnp.bfloat16)
    h1 = jnp.dot(x, w1_ref[...], preferred_element_type=jnp.float32)
    h1 = jnp.maximum(h1 + b1_ref[...], 0.0).astype(jnp.bfloat16)
    # layer 2: linear + relu
    h2 = jnp.dot(h1, w2_ref[...], preferred_element_type=jnp.float32)
    h2 = jnp.maximum(h2 + b2_ref[...], 0.0).astype(jnp.bfloat16)
    # layer 3: linear + tanh (padded output lanes carry tanh(0) = 0, sliced off outside)
    a = jnp.dot(h2, w3_ref[...], preferred_element_type=jnp.float32)
    o_ref[...] = jnp.tanh(a + b3_ref[...]).astype(o_ref.dtype)


def prepare_actor_params(params):
    """One-time (offline) pad + bf16 cast of the f32 (in,out)-layout parameters."""
    w1, b1, w2, b2, w3, b3 = params
    w1_p = jnp.pad(w1, ((0, SP - STATE_DIM), (0, H1P - H1))).astype(jnp.bfloat16)
    b1_p = jnp.pad(b1.astype(jnp.float32).reshape(1, -1), ((0, 0), (0, H1P - H1)))
    w2_p = jnp.pad(w2, ((0, H1P - H1), (0, H2P - H2))).astype(jnp.bfloat16)
    b2_p = jnp.pad(b2.astype(jnp.float32).reshape(1, -1), ((0, 0), (0, H2P - H2)))
    w3_p = jnp.pad(w3, ((0, H2P - H2), (0, AP - ACTION_DIM))).astype(jnp.bfloat16)
    b3_p = jnp.pad(b3.astype(jnp.float32).reshape(1, -1), ((0, 0), (0, AP - ACTION_DIM)))
    prepared = (w1_p, b1_p, w2_p, b2_p, w3_p, b3_p)
    return tuple(jax.device_put(t) for t in prepared)


@jax.jit
def actor_forward(s, prepared):
    """s: (B, STATE_DIM) f32, prepared = prepare_actor_params(...) -> (B, ACTION_DIM) f32."""
    w1_p, b1_p, w2_p, b2_p, w3_p, b3_p = prepared
    B = s.shape[0]

    # Batch tiling: small batches run as a single tile; large batches use 256-row tiles
    # so the h1/h2 intermediates stay bounded while weights stay VMEM-resident.
    Bt = 256 if B >= 256 else _round_up(max(B, 1), 8)
    Bp = _round_up(B, Bt)
    nb = Bp // Bt

    # Only the (tiny) state is padded per call; weights were pre-padded offline.
    s_p = jnp.pad(s.astype(jnp.float32), ((0, Bp - B), (0, SP - STATE_DIM)))

    const = lambda i: (0, 0)  # weights/biases: same block every step -> no re-fetch
    out_p = pl.pallas_call(
        _actor_kernel,
        out_shape=jax.ShapeDtypeStruct((Bp, AP), jnp.float32),
        grid=(nb,),
        in_specs=[
            pl.BlockSpec((Bt, SP), lambda i: (i, 0)),
            pl.BlockSpec((SP, H1P), const),
            pl.BlockSpec((1, H1P), const),
            pl.BlockSpec((H1P, H2P), const),
            pl.BlockSpec((1, H2P), const),
            pl.BlockSpec((H2P, AP), const),
            pl.BlockSpec((1, AP), const),
        ],
        out_specs=pl.BlockSpec((Bt, AP), lambda i: (i, 0)),
        compiler_params=pltpu.CompilerParams(
            dimension_semantics=("parallel",),   # batch tiles shard across TCs on v7x
            vmem_limit_bytes=16 << 20,
        ),
    )(s_p, w1_p, b1_p, w2_p, b2_p, w3_p, b3_p)

    return out_p[:B, :ACTION_DIM]


def init_actor_params(key):
    """Deterministic PyTorch-style Linear init: U(-1/sqrt(fan_in), +1/sqrt(fan_in))."""
    keys = jax.random.split(key, 6)

    def linear(kw, kb, fan_in, fan_out):
        bound = 1.0 / jnp.sqrt(float(fan_in))
        w = jax.random.uniform(kw, (fan_in, fan_out), jnp.float32, -bound, bound)
        b = jax.random.uniform(kb, (fan_out,), jnp.float32, -bound, bound)
        return w, b

    w1, b1 = linear(keys[0], keys[1], STATE_DIM, H1)
    w2, b2 = linear(keys[2], keys[3], H1, H2)
    w3, b3 = linear(keys[4], keys[5], H2, ACTION_DIM)
    return (w1, b1, w2, b2, w3, b3)


def actor_forward_ref(s, params):
    w1, b1, w2, b2, w3, b3 = params
    h1 = jax.nn.relu(s @ w1 + b1)
    h2 = jax.nn.relu(h1 @ w2 + b2)
    return jnp.tanh(h2 @ w3 + b3)


if __name__ == "__main__":
    key = jax.random.PRNGKey(0)
    pkey, skey1, skey2 = jax.random.split(key, 3)

    params = init_actor_params(pkey)
    prepared = prepare_actor_params(params)  # offline: pad + bf16 cast once

    # Small batch (single tile), matches the original module usage.
    s_small = jax.random.normal(skey1, (2, STATE_DIM), jnp.float32)
    out_small = jax.block_until_ready(actor_forward(s_small, prepared))
    ref_small = actor_forward_ref(s_small, params)
    assert out_small.shape == (2, ACTION_DIM), out_small.shape
    # bf16 weights -> loosened tolerance vs. the f32 reference.
    assert jnp.allclose(out_small, ref_small, atol=3e-2, rtol=0.0), (out_small, ref_small)

    # Ragged larger batch: exercises the batch grid (nb > 1) and batch padding.
    s_big = jax.random.normal(skey2, (300, STATE_DIM), jnp.float32)
    out_big = jax.block_until_ready(actor_forward(s_big, prepared))
    ref_big = actor_forward_ref(s_big, params)
    assert out_big.shape == (300, ACTION_DIM), out_big.shape
    assert jnp.allclose(out_big, ref_big, atol=3e-2, rtol=0.0)

    print("KERNEL_OK")
</pallas_src>

<mosaic_0001>
module attributes {stable_mosaic.version = 11 : i64} {
  func.func @_actor_kernel(%arg0: i32, %arg1: memref<8x32xf32, #tpu.memory_space<vmem>>, %arg2: memref<32x896xbf16, #tpu.memory_space<vmem>>, %arg3: memref<1x896xf32, #tpu.memory_space<vmem>>, %arg4: memref<896x640xbf16, #tpu.memory_space<vmem>>, %arg5: memref<1x640xf32, #tpu.memory_space<vmem>>, %arg6: memref<640x128xbf16, #tpu.memory_space<vmem>>, %arg7: memref<1x128xf32, #tpu.memory_space<vmem>>, %arg8: memref<8x128xf32, #tpu.memory_space<vmem>>) attributes {dimension_semantics = [#tpu.dimension_semantics<parallel>], iteration_bounds = array<i64: 1>, scalar_prefetch = 0 : i64, scratch_operands = 0 : i64, tpu.core_type = #tpu.core_type<tc>, window_params = [{transform_indices = @transform_0, window_bounds = array<i64: 8, 32>}, {pipeline_mode = #tpu.pipeline_mode<synchronous>, transform_indices = @transform_1, window_bounds = array<i64: 32, 896>}, {pipeline_mode = #tpu.pipeline_mode<synchronous>, transform_indices = @transform_2, window_bounds = array<i64: 1, 896>}, {pipeline_mode = #tpu.pipeline_mode<synchronous>, transform_indices = @transform_3, window_bounds = array<i64: 896, 640>}, {pipeline_mode = #tpu.pipeline_mode<synchronous>, transform_indices = @transform_4, window_bounds = array<i64: 1, 640>}, {pipeline_mode = #tpu.pipeline_mode<synchronous>, transform_indices = @transform_5, window_bounds = array<i64: 640, 128>}, {pipeline_mode = #tpu.pipeline_mode<synchronous>, transform_indices = @transform_6, window_bounds = array<i64: 1, 128>}, {transform_indices = @transform_7, window_bounds = array<i64: 8, 128>}]} {
    %c0 = arith.constant 0 : index
    %c0_0 = arith.constant 0 : index
    %0 = vector.load %arg1[%c0, %c0_0] : memref<8x32xf32, #tpu.memory_space<vmem>>, vector<8x32xf32>
    %1 = arith.truncf %0 : vector<8x32xf32> to vector<8x32xbf16>
    %c0_1 = arith.constant 0 : index
    %c0_2 = arith.constant 0 : index
    %2 = vector.load %arg2[%c0_1, %c0_2] : memref<32x896xbf16, #tpu.memory_space<vmem>>, vector<32x896xbf16>
    %cst = arith.constant dense<0.000000e+00> : vector<8x896xf32>
    %3 = tpu.matmul %1, %2, %cst {dimension_numbers = #tpu.dot_dimension_numbers<[1], [0], [0], [1], [0, 0, 1, 1], [], []>} : vector<8x32xbf16>, vector<32x896xbf16>, vector<8x896xf32> -> vector<8x896xf32>
    %c0_3 = arith.constant 0 : index
    %c0_4 = arith.constant 0 : index
    %4 = vector.load %arg3[%c0_3, %c0_4] : memref<1x896xf32, #tpu.memory_space<vmem>>, vector<1x896xf32>
    %5 = vector.broadcast %4 : vector<1x896xf32> to vector<8x896xf32>
    %6 = arith.addf %3, %5 : vector<8x896xf32>
    %cst_5 = arith.constant 0.000000e+00 : f32
    %7 = vector.broadcast %cst_5 : f32 to vector<8x896xf32>
    %8 = arith.maximumf %6, %7 : vector<8x896xf32>
    %9 = arith.truncf %8 : vector<8x896xf32> to vector<8x896xbf16>
    %c0_6 = arith.constant 0 : index
    %c0_7 = arith.constant 0 : index
    %10 = vector.load %arg4[%c0_6, %c0_7] : memref<896x640xbf16, #tpu.memory_space<vmem>>, vector<896x640xbf16>
    %cst_8 = arith.constant dense<0.000000e+00> : vector<8x640xf32>
    %11 = tpu.matmul %9, %10, %cst_8 {dimension_numbers = #tpu.dot_dimension_numbers<[1], [0], [0], [1], [0, 0, 1, 1], [], []>} : vector<8x896xbf16>, vector<896x640xbf16>, vector<8x640xf32> -> vector<8x640xf32>
    %c0_9 = arith.constant 0 : index
    %c0_10 = arith.constant 0 : index
    %12 = vector.load %arg5[%c0_9, %c0_10] : memref<1x640xf32, #tpu.memory_space<vmem>>, vector<1x640xf32>
    %13 = vector.broadcast %12 : vector<1x640xf32> to vector<8x640xf32>
    %14 = arith.addf %11, %13 : vector<8x640xf32>
    %cst_11 = arith.constant 0.000000e+00 : f32
    %15 = vector.broadcast %cst_11 : f32 to vector<8x640xf32>
    %16 = arith.maximumf %14, %15 : vector<8x640xf32>
    %17 = arith.truncf %16 : vector<8x640xf32> to vector<8x640xbf16>
    %c0_12 = arith.constant 0 : index
    %c0_13 = arith.constant 0 : index
    %18 = vector.load %arg6[%c0_12, %c0_13] : memref<640x128xbf16, #tpu.memory_space<vmem>>, vector<640x128xbf16>
    %cst_14 = arith.constant dense<0.000000e+00> : vector<8x128xf32>
    %19 = tpu.matmul %17, %18, %cst_14 {dimension_numbers = #tpu.dot_dimension_numbers<[1], [0], [0], [1], [0, 0, 1, 1], [], []>} : vector<8x640xbf16>, vector<640x128xbf16>, vector<8x128xf32> -> vector<8x128xf32>
    %c0_15 = arith.constant 0 : index
    %c0_16 = arith.constant 0 : index
    %20 = vector.load %arg7[%c0_15, %c0_16] : memref<1x128xf32, #tpu.memory_space<vmem>>, vector<1x128xf32>
    %21 = vector.broadcast %20 : vector<1x128xf32> to vector<8x128xf32>
    %22 = arith.addf %19, %21 : vector<8x128xf32>
    %23 = math.tanh %22 : vector<8x128xf32>
    %c0_17 = arith.constant 0 : index
    %c0_18 = arith.constant 0 : index
    %24 = vector.load %arg8[%c0_17, %c0_18] : memref<8x128xf32, #tpu.memory_space<vmem>>, vector<8x128xf32>
    tpu.vector_store %arg8[%c0_17, %c0_18], %23 {strides = array<i32>} : memref<8x128xf32, #tpu.memory_space<vmem>>, vector<8x128xf32>,
    return
  }
  func.func @transform_0(%arg0: i32) -> (i32, i32) {
    %c0_i32 = arith.constant 0 : i32
    %c0_i32_0 = arith.constant 0 : i32
    return %arg0, %c0_i32 : i32, i32
  }
  func.func @transform_1(%arg0: i32) -> (i32, i32) {
    %c0_i32 = arith.constant 0 : i32
    %c0_i32_0 = arith.constant 0 : i32
    %c0_i32_1 = arith.constant 0 : i32
    return %c0_i32, %c0_i32_0 : i32, i32
  }
  func.func @transform_2(%arg0: i32) -> (i32, i32) {
    %c0_i32 = arith.constant 0 : i32
    %c0_i32_0 = arith.constant 0 : i32
    %c0_i32_1 = arith.constant 0 : i32
    return %c0_i32, %c0_i32_0 : i32, i32
  }
  func.func @transform_3(%arg0: i32) -> (i32, i32) {
    %c0_i32 = arith.constant 0 : i32
    %c0_i32_0 = arith.constant 0 : i32
    %c0_i32_1 = arith.constant 0 : i32
    return %c0_i32, %c0_i32_0 : i32, i32
  }
  func.func @transform_4(%arg0: i32) -> (i32, i32) {
    %c0_i32 = arith.constant 0 : i32
    %c0_i32_0 = arith.constant 0 : i32
    %c0_i32_1 = arith.constant 0 : i32
    return %c0_i32, %c0_i32_0 : i32, i32
  }
  func.func @transform_5(%arg0: i32) -> (i32, i32) {
    %c0_i32 = arith.constant 0 : i32
    %c0_i32_0 = arith.constant 0 : i32
    %c0_i32_1 = arith.constant 0 : i32
    return %c0_i32, %c0_i32_0 : i32, i32
  }
  func.func @transform_6(%arg0: i32) -> (i32, i32) {
    %c0_i32 = arith.constant 0 : i32
    %c0_i32_0 = arith.constant 0 : i32
    %c0_i32_1 = arith.constant 0 : i32
    return %c0_i32, %c0_i32_0 : i32, i32
  }
  func.func @transform_7(%arg0: i32) -> (i32, i32) {
    %c0_i32 = arith.constant 0 : i32
    %c0_i32_0 = arith.constant 0 : i32
    return %arg0, %c0_i32 : i32, i32
  }
}

</mosaic_0001>

<llo_original>
// kernel: actor_forward.1
$region0: #{actor_forward.1}
  #allocation0 [shape = 'u32[]', space=smem, size = 0x4, offset = 0x4, fixed_abs, tag = 'smem constant byte address 0x4 - core index']
  #allocation1 [shape = 'u32[144,128]{1,0:T(1,128)}', space=vmem, size = 0x12000, scoped, tag = 'internal scratch']
  %s0 = inlined_call_operand.vmem [shape: f32[8,32], index: 0, kind: input, shape index: {}]
  %s1 = inlined_call_operand.hbm [shape: bf16[32,896], index: 1, kind: input, shape index: {}]
  %s2 = inlined_call_operand.hbm [shape: f32[1,896], index: 2, kind: input, shape index: {}]
  %s3 = inlined_call_operand.hbm [shape: bf16[896,640], index: 3, kind: input, shape index: {}]
  %s4 = inlined_call_operand.hbm [shape: f32[1,640], index: 4, kind: input, shape index: {}]
  %s5 = inlined_call_operand.hbm [shape: bf16[640,128], index: 5, kind: input, shape index: {}]
  %s6 = inlined_call_operand.hbm [shape: f32[1,128], index: 6, kind: input, shape index: {}]
  %s7 = inlined_call_operand.vmem [shape: f32[8,128], index: 7, kind: output, shape index: {}]
  %s8 = sld [smem:[#allocation0]]
  $region62: #{actor_forward.1} parent=0
    _
  %s10 = ssub.s32 1, %s8
  %s11 = scalar_select 0, %s10, %s8
  $region1: #{actor_forward.1} parent=0
    #allocation2 [shape = 'u8[57344]{0}', space=vmem, size = 0xe000, scoped, tag = 'input window, operand 1, single buffered']
    #allocation3 [shape = 's32[1]{0}', space=sflag, size = 0x4, scoped, tag = 'scoped memory for actor_forward.1']
    #allocation4 [shape = 'u8[3584]{0}', space=vmem, size = 0x1000, scoped, tag = 'input window, operand 2, single buffered']
    #allocation5 [shape = 's32[1]{0}', space=sflag, size = 0x4, scoped, tag = 'scoped memory for actor_forward.1']
    #allocation6 [shape = 'u8[1146880]{0}', space=vmem, size = 0x118000, scoped, tag = 'input window, operand 3, single buffered']
    #allocation7 [shape = 'u8[2560]{0}', space=vmem, size = 0xc00, scoped, tag = 'input window, operand 4, single buffered']
    #allocation8 [shape = 's32[1]{0}', space=sflag, size = 0x4, scoped, tag = 'scoped memory for actor_forward.1']
    #allocation9 [shape = 'u8[163840]{0}', space=vmem, size = 0x28000, scoped, tag = 'input window, operand 5, single buffered']
    #allocation10 [shape = 'u8[512]{0}', space=vmem, size = 0x400, scoped, tag = 'input window, operand 6, single buffered']
    #allocation11 [shape = 's32[1]{0}', space=sflag, size = 0x4, scoped, tag = 'scoped memory for actor_forward.1']
    %12 = vsyncpa [#allocation3], 0
    %13 = vsyncpa [#allocation5], 0
    %14 = vsyncpa [#allocation8], 0
    %15 = vsyncpa [#allocation11], 0
    // Predicated region
    $region2: #{actor_forward.1} parent=1 // pred_check
      _
    $region3: #{actor_forward.1} parent=1 // pred_check_branch
      %17 = sbr.rel (0) target = $region5
    $region4: #{actor_forward.1} parent=1 // pred_region
      _
    $region5: #{actor_forward.1} parent=1 // pred_fallthru
      _
    // Predicated region
    $region6: #{actor_forward.1} parent=1 // pred_check
      _
    $region7: #{actor_forward.1} parent=1 // pred_check_branch
      %19 = sbr.rel (0) target = $region9
    $region8: #{actor_forward.1} parent=1 // pred_region
      %s21 = ssub.s32 1792, 1792
      %22 = vsyncadd [#allocation3], %s21
      %s23 = sshll.u32 [#allocation2], 4
      %s24 = int_to_ptr.vmem [resolvable:$true] %s23
      %29 = dma.hbm_to_vmem [thread:$0]  %s1, 1792, %s24, [#allocation3], 448, 448, 28
    $region9: #{actor_forward.1} parent=1 // pred_fallthru
      _
    // Predicated region
    $region10: #{actor_forward.1} parent=1 // pred_check
      _
    $region11: #{actor_forward.1} parent=1 // pred_check_branch
      %31 = sbr.rel (0) target = $region13
    $region12: #{actor_forward.1} parent=1 // pred_region
      %s33 = ssub.s32 112, 112
      %34 = vsyncadd [#allocation5], %s33
      %s36 = sshll.u32 [#allocation4], 4
      %s37 = int_to_ptr.vmem [resolvable:$true] %s36
      %39 = dma.hbm_to_vmem [thread:$0]  %s2, 112, %s37, [#allocation5]
    $region13: #{actor_forward.1} parent=1 // pred_fallthru
      _
    // Predicated region
    $region14: #{actor_forward.1} parent=1 // pred_check
      _
    $region15: #{actor_forward.1} parent=1 // pred_check_branch
      %41 = sbr.rel (0) target = $region17
    $region16: #{actor_forward.1} parent=1 // pred_region
      %s43 = ssub.s32 35840, 35840
      %44 = vsyncadd [#allocation5], %s43
      %s45 = sshll.u32 [#allocation6], 4
      %s46 = int_to_ptr.vmem [resolvable:$true] %s45
      %51 = dma.hbm_to_vmem [thread:$0]  %s3, 35840, %s46, [#allocation5], 320, 320, 20
    $region17: #{actor_forward.1} parent=1 // pred_fallthru
      _
    // Predicated region
    $region18: #{actor_forward.1} parent=1 // pred_check
      _
    $region19: #{actor_forward.1} parent=1 // pred_check_branch
      %53 = sbr.rel (0) target = $region21
    $region20: #{actor_forward.1} parent=1 // pred_region
      %s55 = ssub.s32 80, 80
      %56 = vsyncadd [#allocation8], %s55
      %s58 = sshll.u32 [#allocation7], 4
      %s59 = int_to_ptr.vmem [resolvable:$true] %s58
      %61 = dma.hbm_to_vmem [thread:$0]  %s4, 80, %s59, [#allocation8]
    $region21: #{actor_forward.1} parent=1 // pred_fallthru
      _
    // Predicated region
    $region22: #{actor_forward.1} parent=1 // pred_check
      _
    $region23: #{actor_forward.1} parent=1 // pred_check_branch
      %63 = sbr.rel (0) target = $region25
    $region24: #{actor_forward.1} parent=1 // pred_region
      %s65 = ssub.s32 5120, 5120
      %66 = vsyncadd [#allocation8], %s65
      %s67 = sshll.u32 [#allocation9], 4
      %s68 = int_to_ptr.vmem [resolvable:$true] %s67
      %73 = dma.hbm_to_vmem [thread:$0]  %s5, 5120, %s68, [#allocation8], 64, 64, 4
    $region25: #{actor_forward.1} parent=1 // pred_fallthru
      _
    // Predicated region
    $region26: #{actor_forward.1} parent=1 // pred_check
      _
    $region27: #{actor_forward.1} parent=1 // pred_check_branch
      %75 = sbr.rel (0) target = $region29
    $region28: #{actor_forward.1} parent=1 // pred_region
      %s77 = ssub.s32 16, 16
      %78 = vsyncadd [#allocation11], %s77
      %s80 = sshll.u32 [#allocation10], 4
      %s81 = int_to_ptr.vmem [resolvable:$true] %s80
      %83 = dma.hbm_to_vmem [thread:$0]  %s6, 16, %s81, [#allocation11]
    $region29: #{actor_forward.1} parent=1 // pred_fallthru
      _
    // Predicated region
    $region30: #{actor_forward.1} parent=1 // pred_check
      _
    $region31: #{actor_forward.1} parent=1 // pred_check_branch
      %85 = sbr.rel (0) target = $region33
    $region32: #{actor_forward.1} parent=1 // pred_region
      %86 = dma.done [#allocation3], 1792
    $region33: #{actor_forward.1} parent=1 // pred_fallthru
      _
    // Predicated region
    $region34: #{actor_forward.1} parent=1 // pred_check
      _
    $region35: #{actor_forward.1} parent=1 // pred_check_branch
      %88 = sbr.rel (0) target = $region37
    $region36: #{actor_forward.1} parent=1 // pred_region
      %89 = dma.done [#allocation5], 112
    $region37: #{actor_forward.1} parent=1 // pred_fallthru
      _
    // Predicated region
    $region38: #{actor_forward.1} parent=1 // pred_check
      _
    $region39: #{actor_forward.1} parent=1 // pred_check_branch
      %91 = sbr.rel (0) target = $region41
    $region40: #{actor_forward.1} parent=1 // pred_region
      %92 = dma.done [#allocation5], 35840
    $region41: #{actor_forward.1} parent=1 // pred_fallthru
      _
    // Predicated region
    $region42: #{actor_forward.1} parent=1 // pred_check
      _
    $region43: #{actor_forward.1} parent=1 // pred_check_branch
      %94 = sbr.rel (0) target = $region45
    $region44: #{actor_forward.1} parent=1 // pred_region
      %95 = dma.done [#allocation8], 80
    $region45: #{actor_forward.1} parent=1 // pred_fallthru
      _
    // Predicated region
    $region46: #{actor_forward.1} parent=1 // pred_check
      _
    $region47: #{actor_forward.1} parent=1 // pred_check_branch
      %97 = sbr.rel (0) target = $region49
    $region48: #{actor_forward.1} parent=1 // pred_region
      %98 = dma.done [#allocation8], 5120
    $region49: #{actor_forward.1} parent=1 // pred_fallthru
      _
    // Predicated region
    $region50: #{actor_forward.1} parent=1 // pred_check
      _
    $region51: #{actor_forward.1} parent=1 // pred_check_branch
      %100 = sbr.rel (0) target = $region53
    $region52: #{actor_forward.1} parent=1 // pred_region
      %101 = dma.done [#allocation11], 16
    $region53: #{actor_forward.1} parent=1 // pred_fallthru
      _
    %v103 = vld [vmem:[%s0] sm:$0xff]
    %v104 = vpack.c.bf16 %v103, %v103
    %v105 = vld [vmem:[#allocation2] sm:$0xff]
    %v106 = vld [vmem:[#allocation2 + $0x8] sm:$0xff]
    %v107 = vld [vmem:[#allocation2 + $0x10] sm:$0xff]
    %v108 = vld [vmem:[#allocation2 + $0x18] sm:$0xf]
    %v109 = vld [vmem:[#allocation2 + $0x1c] sm:$0xff]
    %v110 = vld [vmem:[#allocation2 + $0x24] sm:$0xff]
    %v111 = vld [vmem:[#allocation2 + $0x2c] sm:$0xff]
    %v112 = vld [vmem:[#allocation2 + $0x34] sm:$0xf]
    %v113 = vld [vmem:[#allocation2 + $0x38] sm:$0xff]
    %v114 = vld [vmem:[#allocation2 + $0x40] sm:$0xff]
    %v115 = vld [vmem:[#allocation2 + $0x48] sm:$0xff]
    %v116 = vld [vmem:[#allocation2 + $0x50] sm:$0xf]
    %v117 = vld [vmem:[#allocation2 + $0x54] sm:$0xff]
    %v118 = vld [vmem:[#allocation2 + $0x5c] sm:$0xff]
    %v119 = vld [vmem:[#allocation2 + $0x64] sm:$0xff]
    %v120 = vld [vmem:[#allocation2 + $0x6c] sm:$0xf]
    %v121 = vld [vmem:[#allocation4] sm:$0xff]
    %v123 = vlaneseq
    %v124 = vshrl.u32 %v123, 7
    %v125 = vsub.s32 0, %v124
    %v126 = vrot.slane %v121, %v125
    %v127 = vlaneseq
    %v128 = vshrl.u32 %v127, 7
    %v129 = vsub.s32 1, %v128
    %v130 = vrot.slane %v121, %v129
    %v131 = vlaneseq
    %v132 = vshrl.u32 %v131, 7
    %v133 = vsub.s32 2, %v132
    %v134 = vrot.slane %v121, %v133
    %v135 = vlaneseq
    %v136 = vshrl.u32 %v135, 7
    %v137 = vsub.s32 3, %v136
    %v138 = vrot.slane %v121, %v137
    %v139 = vlaneseq
    %v140 = vshrl.u32 %v139, 7
    %v141 = vsub.s32 4, %v140
    %v142 = vrot.slane %v121, %v141
    %v143 = vlaneseq
    %v144 = vshrl.u32 %v143, 7
    %v145 = vsub.s32 5, %v144
    %v146 = vrot.slane %v121, %v145
    %v147 = vlaneseq
    %v148 = vshrl.u32 %v147, 7
    %v149 = vsub.s32 6, %v148
    %v150 = vrot.slane %v121, %v149
    %v174 = vunpack.c.l.b16 %v105
    %v175 = vunpack.c.h.b16 %v105
    %v176 = vunpack.c.l.b16 %v106
    %v177 = vunpack.c.h.b16 %v106
    %v178 = vunpack.c.l.b16 %v107
    %v179 = vunpack.c.h.b16 %v107
    %v180 = vunpack.c.l.b16 %v108
    %v181 = vunpack.c.l.b16 %v109
    %v182 = vunpack.c.h.b16 %v109
    %v183 = vunpack.c.l.b16 %v110
    %v184 = vunpack.c.h.b16 %v110
    %v185 = vunpack.c.l.b16 %v111
    %v186 = vunpack.c.h.b16 %v111
    %v187 = vunpack.c.l.b16 %v112
    %v188 = vunpack.c.l.b16 %v113
    %v189 = vunpack.c.h.b16 %v113
    %v190 = vunpack.c.l.b16 %v114
    %v191 = vunpack.c.h.b16 %v114
    %v192 = vunpack.c.l.b16 %v115
    %v193 = vunpack.c.h.b16 %v115
    %v194 = vunpack.c.l.b16 %v116
    %v195 = vunpack.c.l.b16 %v117
    %v196 = vunpack.c.h.b16 %v117
    %v197 = vunpack.c.l.b16 %v118
    %v198 = vunpack.c.h.b16 %v118
    %v199 = vunpack.c.l.b16 %v119
    %v200 = vunpack.c.h.b16 %v119
    %v201 = vunpack.c.l.b16 %v120
    %v202 = vpack.c.b16 %v181, %v174
    %v203 = vpack.c.b16 %v182, %v175
    %v204 = vpack.c.b16 %v183, %v176
    %v205 = vpack.c.b16 %v184, %v177
    %v206 = vpack.c.b16 %v185, %v178
    %v207 = vpack.c.b16 %v186, %v179
    %v208 = vpack.c.b16 %v187, %v180
    %v209 = vpack.c.b16 %v195, %v188
    %v210 = vpack.c.b16 %v196, %v189
    %v211 = vpack.c.b16 %v197, %v190
    %v212 = vpack.c.b16 %v198, %v191
    %v213 = vpack.c.b16 %v199, %v192
    %v214 = vpack.c.b16 %v200, %v193
    %v215 = vpack.c.b16 %v201, %v194
    %vm230 = vcmask 261120
    %v232 = vsel %vm230, %v104, 0
    %234 = vmatprep.subr.bf16.mxu0 %v203
    %235 = vmatpush1.bf16.msra.mxu0 %v202
    %236 = vmatprep.subr.bf16.mxu0 %v210
    %237 = vmatpush1.bf16.msra.mxu0 %v209
    %238 = vmatprep.subr.bf16.mxu0 0
    %239 = vmatpush1.bf16.msra.mxu0 0
    %240 = vmatprep.subr.bf16.mxu0 0
    %241 = vmatpush1.bf16.msra.mxu0 0
    %242 = vmatprep.subr.bf16.mxu0 0
    %243 = vmatpush1.bf16.msra.mxu0 0
    %244 = vmatprep.subr.bf16.mxu0 0
    %245 = vmatpush1.bf16.msra.mxu0 0
    %246 = vmatprep.subr.bf16.mxu0 0
    %247 = vmatpush1.bf16.msra.mxu0 0
    %248 = vmatprep.subr.bf16.mxu0 0
    %249 = vmatpush1.bf16.msra.mxu0 0
    %250 = vmatprep.subr.bf16.mxu0 0
    %251 = vmatpush1.bf16.msra.mxu0 0
    %252 = vmatprep.subr.bf16.mxu0 0
    %253 = vmatpush1.bf16.msra.mxu0 0
    %254 = vmatprep.subr.bf16.mxu0 0
    %255 = vmatpush1.bf16.msra.mxu0 0
    %256 = vmatprep.subr.bf16.mxu0 0
    %257 = vmatpush1.bf16.msra.mxu0 0
    %258 = vmatprep.subr.bf16.mxu0 0
    %259 = vmatpush1.bf16.msra.mxu0 0
    %260 = vmatprep.subr.bf16.mxu0 0
    %261 = vmatpush1.bf16.msra.mxu0 0
    %262 = vmatprep.subr.bf16.mxu0 0
    %263 = vmatpush1.bf16.msra.mxu0 0
    %264 = vmatprep.subr.bf16.mxu0 0
    %265 = vmatpush1.bf16.msra.mxu0 0
    %266 = vmatprep.mubr.bf16.mxu0 0
    %267 = vmatmul.mubr.bf16.gmra.mrb[0].mxu0 %v232
    %v268 = vpop.f32.mrb[0].mxu0
    %v269 = vadd.f32 %v126, %v268
    %v270 = vpop.f32.mrb[0].mxu0
    %v271 = vadd.f32 %v130, %v270
    %v272 = vpop.f32.mrb[0].mxu0
    %v273 = vpop.f32.mrb[0].mxu0
    %274 = vdwg.mxu0
    %275 = vmatprep.subr.bf16.mxu0 %v205
    %276 = vmatpush1.bf16.msra.mxu0 %v204
    %277 = vmatprep.subr.bf16.mxu0 %v212
    %278 = vmatpush1.bf16.msra.mxu0 %v211
    %279 = vmatprep.subr.bf16.mxu0 0
    %280 = vmatpush1.bf16.msra.mxu0 0
    %281 = vmatprep.subr.bf16.mxu0 0
    %282 = vmatpush1.bf16.msra.mxu0 0
    %283 = vmatprep.subr.bf16.mxu0 0
    %284 = vmatpush1.bf16.msra.mxu0 0
    %285 = vmatprep.subr.bf16.mxu0 0
    %286 = vmatpush1.bf16.msra.mxu0 0
    %287 = vmatprep.subr.bf16.mxu0 0
    %288 = vmatpush1.bf16.msra.mxu0 0
    %289 = vmatprep.subr.bf16.mxu0 0
    %290 = vmatpush1.bf16.msra.mxu0 0
    %291 = vmatprep.subr.bf16.mxu0 0
    %292 = vmatpush1.bf16.msra.mxu0 0
    %293 = vmatprep.subr.bf16.mxu0 0
    %294 = vmatpush1.bf16.msra.mxu0 0
    %295 = vmatprep.subr.bf16.mxu0 0
    %296 = vmatpush1.bf16.msra.mxu0 0
    %297 = vmatprep.subr.bf16.mxu0 0
    %298 = vmatpush1.bf16.msra.mxu0 0
    %299 = vmatprep.subr.bf16.mxu0 0
    %300 = vmatpush1.bf16.msra.mxu0 0
    %301 = vmatprep.subr.bf16.mxu0 0
    %302 = vmatpush1.bf16.msra.mxu0 0
    %303 = vmatprep.subr.bf16.mxu0 0
    %304 = vmatpush1.bf16.msra.mxu0 0
    %305 = vmatprep.subr.bf16.mxu0 0
    %306 = vmatpush1.bf16.msra.mxu0 0
    %307 = vmatprep.mubr.bf16.mxu0 0
    %308 = vmatmul.mubr.bf16.gmra.mrb[0].mxu0 %v232
    %v309 = vpop.f32.mrb[0].mxu0
    %v310 = vadd.f32 %v134, %v309
    %v311 = vpop.f32.mrb[0].mxu0
    %v312 = vadd.f32 %v138, %v311
    %v313 = vpop.f32.mrb[0].mxu0
    %v314 = vpop.f32.mrb[0].mxu0
    %315 = vdwg.mxu0
    %316 = vmatprep.subr.bf16.mxu0 %v207
    %317 = vmatpush1.bf16.msra.mxu0 %v206
    %318 = vmatprep.subr.bf16.mxu0 %v214
    %319 = vmatpush1.bf16.msra.mxu0 %v213
    %320 = vmatprep.subr.bf16.mxu0 0
    %321 = vmatpush1.bf16.msra.mxu0 0
    %322 = vmatprep.subr.bf16.mxu0 0
    %323 = vmatpush1.bf16.msra.mxu0 0
    %324 = vmatprep.subr.bf16.mxu0 0
    %325 = vmatpush1.bf16.msra.mxu0 0
    %326 = vmatprep.subr.bf16.mxu0 0
    %327 = vmatpush1.bf16.msra.mxu0 0
    %328 = vmatprep.subr.bf16.mxu0 0
    %329 = vmatpush1.bf16.msra.mxu0 0
    %330 = vmatprep.subr.bf16.mxu0 0
    %331 = vmatpush1.bf16.msra.mxu0 0
    %332 = vmatprep.subr.bf16.mxu0 0
    %333 = vmatpush1.bf16.msra.mxu0 0
    %334 = vmatprep.subr.bf16.mxu0 0
    %335 = vmatpush1.bf16.msra.mxu0 0
    %336 = vmatprep.subr.bf16.mxu0 0
    %337 = vmatpush1.bf16.msra.mxu0 0
    %338 = vmatprep.subr.bf16.mxu0 0
    %339 = vmatpush1.bf16.msra.mxu0 0
    %340 = vmatprep.subr.bf16.mxu0 0
    %341 = vmatpush1.bf16.msra.mxu0 0
    %342 = vmatprep.subr.bf16.mxu0 0
    %343 = vmatpush1.bf16.msra.mxu0 0
    %344 = vmatprep.subr.bf16.mxu0 0
    %345 = vmatpush1.bf16.msra.mxu0 0
    %346 = vmatprep.subr.bf16.mxu0 0
    %347 = vmatpush1.bf16.msra.mxu0 0
    %348 = vmatprep.mubr.bf16.mxu0 0
    %349 = vmatmul.mubr.bf16.gmra.mrb[0].mxu0 %v232
    %v350 = vpop.f32.mrb[0].mxu0
    %v351 = vadd.f32 %v142, %v350
    %v352 = vpop.f32.mrb[0].mxu0
    %v353 = vadd.f32 %v146, %v352
    %v354 = vpop.f32.mrb[0].mxu0
    %v355 = vpop.f32.mrb[0].mxu0
    %356 = vdwg.mxu0
    %357 = vmatprep.subr.bf16.mxu0 0
    %358 = vmatpush1.bf16.msra.mxu0 %v208
    %359 = vmatprep.subr.bf16.mxu0 0
    %360 = vmatpush1.bf16.msra.mxu0 %v215
    %361 = vmatprep.subr.bf16.mxu0 0
    %362 = vmatpush1.bf16.msra.mxu0 0
    %363 = vmatprep.subr.bf16.mxu0 0
    %364 = vmatpush1.bf16.msra.mxu0 0
    %365 = vmatprep.subr.bf16.mxu0 0
    %366 = vmatpush1.bf16.msra.mxu0 0
    %367 = vmatprep.subr.bf16.mxu0 0
    %368 = vmatpush1.bf16.msra.mxu0 0
    %369 = vmatprep.subr.bf16.mxu0 0
    %370 = vmatpush1.bf16.msra.mxu0 0
    %371 = vmatprep.subr.bf16.mxu0 0
    %372 = vmatpush1.bf16.msra.mxu0 0
    %373 = vmatprep.subr.bf16.mxu0 0
    %374 = vmatpush1.bf16.msra.mxu0 0
    %375 = vmatprep.subr.bf16.mxu0 0
    %376 = vmatpush1.bf16.msra.mxu0 0
    %377 = vmatprep.subr.bf16.mxu0 0
    %378 = vmatpush1.bf16.msra.mxu0 0
    %379 = vmatprep.subr.bf16.mxu0 0
    %380 = vmatpush1.bf16.msra.mxu0 0
    %381 = vmatprep.subr.bf16.mxu0 0
    %382 = vmatpush1.bf16.msra.mxu0 0
    %383 = vmatprep.subr.bf16.mxu0 0
    %384 = vmatpush1.bf16.msra.mxu0 0
    %385 = vmatprep.subr.bf16.mxu0 0
    %386 = vmatpush1.bf16.msra.mxu0 0
    %387 = vmatprep.subr.bf16.mxu0 0
    %388 = vmatpush1.bf16.msra.mxu0 0
    %389 = vmatprep.mubr.bf16.mxu0 0
    %390 = vmatmul.mubr.bf16.gmra.mrb[0].mxu0 %v232
    %v391 = vpop.f32.mrb[0].mxu0
    %v392 = vadd.f32 %v150, %v391
    %v393 = vpop.f32.mrb[0].mxu0
    %v394 = vpop.f32.mrb[0].mxu0
    %v395 = vpop.f32.mrb[0].mxu0
    %396 = vdwg.mxu0
    %v397 = vmax.f32 %v269, 0.0
    %v398 = vmax.f32 %v271, 0.0
    %v399 = vmax.f32 %v310, 0.0
    %v400 = vmax.f32 %v312, 0.0
    %v401 = vmax.f32 %v351, 0.0
    %v402 = vmax.f32 %v353, 0.0
    %v403 = vmax.f32 %v392, 0.0
    %v404 = vpack.c.bf16 %v397, %v397
    %v405 = vpack.c.bf16 %v398, %v398
    %v406 = vpack.c.bf16 %v399, %v399
    %v407 = vpack.c.bf16 %v400, %v400
    %v408 = vpack.c.bf16 %v401, %v401
    %v409 = vpack.c.bf16 %v402, %v402
    %v410 = vpack.c.bf16 %v403, %v403
    %v411 = vld [vmem:[#allocation6] sm:$0xff]
    %v412 = vld [vmem:[#allocation6 + $0x8] sm:$0xff]
    %v413 = vld [vmem:[#allocation6 + $0x10] sm:$0xf]
    %v414 = vld [vmem:[#allocation6 + $0x14] sm:$0xff]
    %v415 = vld [vmem:[#allocation6 + $0x1c] sm:$0xff]
    %v416 = vld [vmem:[#allocation6 + $0x24] sm:$0xf]
    %v417 = vld [vmem:[#allocation6 + $0x28] sm:$0xff]
    %v418 = vld [vmem:[#allocation6 + $0x30] sm:$0xff]
    %v419 = vld [vmem:[#allocation6 + $0x38] sm:$0xf]
    %v420 = vld [vmem:[#allocation6 + $0x3c] sm:$0xff]
    %v421 = vld [vmem:[#allocation6 + $0x44] sm:$0xff]
    %v422 = vld [vmem:[#allocation6 + $0x4c] sm:$0xf]
    %v423 = vld [vmem:[#allocation6 + $0x50] sm:$0xff]
    %v424 = vld [vmem:[#allocation6 + $0x58] sm:$0xff]
    %v425 = vld [vmem:[#allocation6 + $0x60] sm:$0xf]
    %v426 = vld [vmem:[#allocation6 + $0x64] sm:$0xff]
    %v427 = vld [vmem:[#allocation6 + $0x6c] sm:$0xff]
    %v428 = vld [vmem:[#allocation6 + $0x74] sm:$0xf]
    %v429 = vld [vmem:[#allocation6 + $0x78] sm:$0xff]
    %v430 = vld [vmem:[#allocation6 + $0x80] sm:$0xff]
    %v431 = vld [vmem:[#allocation6 + $0x88] sm:$0xf]
    %v432 = vld [vmem:[#allocation6 + $0x8c] sm:$0xff]
    %v433 = vld [vmem:[#allocation6 + $0x94] sm:$0xff]
    %v434 = vld [vmem:[#allocation6 + $0x9c] sm:$0xf]
    %v435 = vld [vmem:[#allocation6 + $0xa0] sm:$0xff]
    %v436 = vld [vmem:[#allocation6 + $0xa8] sm:$0xff]
    %v437 = vld [vmem:[#allocation6 + $0xb0] sm:$0xf]
    %v438 = vld [vmem:[#allocation6 + $0xb4] sm:$0xff]
    %v439 = vld [vmem:[#allocation6 + $0xbc] sm:$0xff]
    %v440 = vld [vmem:[#allocation6 + $0xc4] sm:$0xf]
    %v441 = vld [vmem:[#allocation6 + $0xc8] sm:$0xff]
    %v442 = vld [vmem:[#allocation6 + $0xd0] sm:$0xff]
    %v443 = vld [vmem:[#allocation6 + $0xd8] sm:$0xf]
    %v444 = vld [vmem:[#allocation6 + $0xdc] sm:$0xff]
    %v445 = vld [vmem:[#allocation6 + $0xe4] sm:$0xff]
    %v446 = vld [vmem:[#allocation6 + $0xec] sm:$0xf]
    %v447 = vld [vmem:[#allocation6 + $0xf0] sm:$0xff]
    %v448 = vld [vmem:[#allocation6 + $0xf8] sm:$0xff]
    %v449 = vld [vmem:[#allocation6 + $0x100] sm:$0xf]
    %v450 = vld [vmem:[#allocation6 + $0x104] sm:$0xff]
    %v451 = vld [vmem:[#allocation6 + $0x10c] sm:$0xff]
    %v452 = vld [vmem:[#allocation6 + $0x114] sm:$0xf]
    %v453 = vld [vmem:[#allocation6 + $0x118] sm:$0xff]
    %v454 = vld [vmem:[#allocation6 + $0x120] sm:$0xff]
    %v455 = vld [vmem:[#allocation6 + $0x128] sm:$0xf]
    %v456 = vld [vmem:[#allocation6 + $0x12c] sm:$0xff]
    %v457 = vld [vmem:[#allocation6 + $0x134] sm:$0xff]
    %v458 = vld [vmem:[#allocation6 + $0x13c] sm:$0xf]
    %v459 = vld [vmem:[#allocation6 + $0x140] sm:$0xff]
    %v460 = vld [vmem:[#allocation6 + $0x148] sm:$0xff]
    %v461 = vld [vmem:[#allocation6 + $0x150] sm:$0xf]
    %v462 = vld [vmem:[#allocation6 + $0x154] sm:$0xff]
    %v463 = vld [vmem:[#allocation6 + $0x15c] sm:$0xff]
    %v464 = vld [vmem:[#allocation6 + $0x164] sm:$0xf]
    %v465 = vld [vmem:[#allocation6 + $0x168] sm:$0xff]
    %v466 = vld [vmem:[#allocation6 + $0x170] sm:$0xff]
    %v467 = vld [vmem:[#allocation6 + $0x178] sm:$0xf]
    %v468 = vld [vmem:[#allocation6 + $0x17c] sm:$0xff]
    %v469 = vld [vmem:[#allocation6 + $0x184] sm:$0xff]
    %v470 = vld [vmem:[#allocation6 + $0x18c] sm:$0xf]
    %v471 = vld [vmem:[#allocation6 + $0x190] sm:$0xff]
    %v472 = vld [vmem:[#allocation6 + $0x198] sm:$0xff]
    %v473 = vld [vmem:[#allocation6 + $0x1a0] sm:$0xf]
    %v474 = vld [vmem:[#allocation6 + $0x1a4] sm:$0xff]
    %v475 = vld [vmem:[#allocation6 + $0x1ac] sm:$0xff]
    %v476 = vld [vmem:[#allocation6 + $0x1b4] sm:$0xf]
    %v477 = vld [vmem:[#allocation6 + $0x1b8] sm:$0xff]
    %v478 = vld [vmem:[#allocation6 + $0x1c0] sm:$0xff]
    %v479 = vld [vmem:[#allocation6 + $0x1c8] sm:$0xf]
    %v480 = vld [vmem:[#allocation6 + $0x1cc] sm:$0xff]
    %v481 = vld [vmem:[#allocation6 + $0x1d4] sm:$0xff]
    %v482 = vld [vmem:[#allocation6 + $0x1dc] sm:$0xf]
    %v483 = vld [vmem:[#allocation6 + $0x1e0] sm:$0xff]
    %v484 = vld [vmem:[#allocation6 + $0x1e8] sm:$0xff]
    %v485 = vld [vmem:[#allocation6 + $0x1f0] sm:$0xf]
    %v486 = vld [vmem:[#allocation6 + $0x1f4] sm:$0xff]
    %v487 = vld [vmem:[#allocation6 + $0x1fc] sm:$0xff]
    %v488 = vld [vmem:[#allocation6 + $0x204] sm:$0xf]
    %v489 = vld [vmem:[#allocation6 + $0x208] sm:$0xff]
    %v490 = vld [vmem:[#allocation6 + $0x210] sm:$0xff]
    %v491 = vld [vmem:[#allocation6 + $0x218] sm:$0xf]
    %v492 = vld [vmem:[#allocation6 + $0x21c] sm:$0xff]
    %v493 = vld [vmem:[#allocation6 + $0x224] sm:$0xff]
    %v494 = vld [vmem:[#allocation6 + $0x22c] sm:$0xf]
    %v495 = vld [vmem:[#allocation6 + $0x230] sm:$0xff]
    %v496 = vld [vmem:[#allocation6 + $0x238] sm:$0xff]
    %v497 = vld [vmem:[#allocation6 + $0x240] sm:$0xf]
    %v498 = vld [vmem:[#allocation6 + $0x244] sm:$0xff]
    %v499 = vld [vmem:[#allocation6 + $0x24c] sm:$0xff]
    %v500 = vld [vmem:[#allocation6 + $0x254] sm:$0xf]
    %v501 = vld [vmem:[#allocation6 + $0x258] sm:$0xff]
    %v502 = vld [vmem:[#allocation6 + $0x260] sm:$0xff]
    %v503 = vld [vmem:[#allocation6 + $0x268] sm:$0xf]
    %v504 = vld [vmem:[#allocation6 + $0x26c] sm:$0xff]
    %v505 = vld [vmem:[#allocation6 + $0x274] sm:$0xff]
    %v506 = vld [vmem:[#allocation6 + $0x27c] sm:$0xf]
    %v507 = vld [vmem:[#allocation6 + $0x280] sm:$0xff]
    %v508 = vld [vmem:[#allocation6 + $0x288] sm:$0xff]
    %v509 = vld [vmem:[#allocation6 + $0x290] sm:$0xf]
    %v510 = vld [vmem:[#allocation6 + $0x294] sm:$0xff]
    %v511 = vld [vmem:[#allocation6 + $0x29c] sm:$0xff]
    %v512 = vld [vmem:[#allocation6 + $0x2a4] sm:$0xf]
    %v513 = vld [vmem:[#allocation6 + $0x2a8] sm:$0xff]
    %v514 = vld [vmem:[#allocation6 + $0x2b0] sm:$0xff]
    %v515 = vld [vmem:[#allocation6 + $0x2b8] sm:$0xf]
    %v516 = vld [vmem:[#allocation6 + $0x2bc] sm:$0xff]
    %v517 = vld [vmem:[#allocation6 + $0x2c4] sm:$0xff]
    %v518 = vld [vmem:[#allocation6 + $0x2cc] sm:$0xf]
    %v519 = vld [vmem:[#allocation6 + $0x2d0] sm:$0xff]
    %v520 = vld [vmem:[#allocation6 + $0x2d8] sm:$0xff]
    %v521 = vld [vmem:[#allocation6 + $0x2e0] sm:$0xf]
    %v522 = vld [vmem:[#allocation6 + $0x2e4] sm:$0xff]
    %v523 = vld [vmem:[#allocation6 + $0x2ec] sm:$0xff]
    %v524 = vld [vmem:[#allocation6 + $0x2f4] sm:$0xf]
    %v525 = vld [vmem:[#allocation6 + $0x2f8] sm:$0xff]
    %v526 = vld [vmem:[#allocation6 + $0x300] sm:$0xff]
    %v527 = vld [vmem:[#allocation6 + $0x308] sm:$0xf]
    %v528 = vld [vmem:[#allocation6 + $0x30c] sm:$0xff]
    %v529 = vld [vmem:[#allocation6 + $0x314] sm:$0xff]
    %v530 = vld [vmem:[#allocation6 + $0x31c] sm:$0xf]
    %v531 = vld [vmem:[#allocation6 + $0x320] sm:$0xff]
    %v532 = vld [vmem:[#allocation6 + $0x328] sm:$0xff]
    %v533 = vld [vmem:[#allocation6 + $0x330] sm:$0xf]
    %v534 = vld [vmem:[#allocation6 + $0x334] sm:$0xff]
    %v535 = vld [vmem:[#allocation6 + $0x33c] sm:$0xff]
    %v536 = vld [vmem:[#allocation6 + $0x344] sm:$0xf]
    %v537 = vld [vmem:[#allocation6 + $0x348] sm:$0xff]
    %v538 = vld [vmem:[#allocation6 + $0x350] sm:$0xff]
    %v539 = vld [vmem:[#allocation6 + $0x358] sm:$0xf]
    %v540 = vld [vmem:[#allocation6 + $0x35c] sm:$0xff]
    %v541 = vld [vmem:[#allocation6 + $0x364] sm:$0xff]
    %v542 = vld [vmem:[#allocation6 + $0x36c] sm:$0xf]
    %v543 = vld [vmem:[#allocation6 + $0x370] sm:$0xff]
    %v544 = vld [vmem:[#allocation6 + $0x378] sm:$0xff]
    %v545 = vld [vmem:[#allocation6 + $0x380] sm:$0xf]
    %v546 = vld [vmem:[#allocation6 + $0x384] sm:$0xff]
    %v547 = vld [vmem:[#allocation6 + $0x38c] sm:$0xff]
    %v548 = vld [vmem:[#allocation6 + $0x394] sm:$0xf]
    %v549 = vld [vmem:[#allocation6 + $0x398] sm:$0xff]
    %v550 = vld [vmem:[#allocation6 + $0x3a0] sm:$0xff]
    %v551 = vld [vmem:[#allocation6 + $0x3a8] sm:$0xf]
    %v552 = vld [vmem:[#allocation6 + $0x3ac] sm:$0xff]
    %v553 = vld [vmem:[#allocation6 + $0x3b4] sm:$0xff]
    %v554 = vld [vmem:[#allocation6 + $0x3bc] sm:$0xf]
    %v555 = vld [vmem:[#allocation6 + $0x3c0] sm:$0xff]
    %v556 = vld [vmem:[#allocation6 + $0x3c8] sm:$0xff]
    %v557 = vld [vmem:[#allocation6 + $0x3d0] sm:$0xf]
    %v558 = vld [vmem:[#allocation6 + $0x3d4] sm:$0xff]
    %v559 = vld [vmem:[#allocation6 + $0x3dc] sm:$0xff]
    %v560 = vld [vmem:[#allocation6 + $0x3e4] sm:$0xf]
    %v561 = vld [vmem:[#allocation6 + $0x3e8] sm:$0xff]
    %v562 = vld [vmem:[#allocation6 + $0x3f0] sm:$0xff]
    %v563 = vld [vmem:[#allocation6 + $0x3f8] sm:$0xf]
    %v564 = vld [vmem:[#allocation6 + $0x3fc] sm:$0xff]
    %v565 = vld [vmem:[#allocation6 + $0x404] sm:$0xff]
    %v566 = vld [vmem:[#allocation6 + $0x40c] sm:$0xf]
    %v567 = vld [vmem:[#allocation6 + $0x410] sm:$0xff]
    %v568 = vld [vmem:[#allocation6 + $0x418] sm:$0xff]
    %v569 = vld [vmem:[#allocation6 + $0x420] sm:$0xf]
    %v570 = vld [vmem:[#allocation6 + $0x424] sm:$0xff]
    %v571 = vld [vmem:[#allocation6 + $0x42c] sm:$0xff]
    %v572 = vld [vmem:[#allocation6 + $0x434] sm:$0xf]
    %v573 = vld [vmem:[#allocation6 + $0x438] sm:$0xff]
    %v574 = vld [vmem:[#allocation6 + $0x440] sm:$0xff]
    %v575 = vld [vmem:[#allocation6 + $0x448] sm:$0xf]
    %v576 = vld [vmem:[#allocation6 + $0x44c] sm:$0xff]
    %v577 = vld [vmem:[#allocation6 + $0x454] sm:$0xff]
    %v578 = vld [vmem:[#allocation6 + $0x45c] sm:$0xf]
    %v579 = vld [vmem:[#allocation6 + $0x460] sm:$0xff]
    %v580 = vld [vmem:[#allocation6 + $0x468] sm:$0xff]
    %v581 = vld [vmem:[#allocation6 + $0x470] sm:$0xf]
    %v582 = vld [vmem:[#allocation6 + $0x474] sm:$0xff]
    %v583 = vld [vmem:[#allocation6 + $0x47c] sm:$0xff]
    %v584 = vld [vmem:[#allocation6 + $0x484] sm:$0xf]
    %v585 = vld [vmem:[#allocation6 + $0x488] sm:$0xff]
    %v586 = vld [vmem:[#allocation6 + $0x490] sm:$0xff]
    %v587 = vld [vmem:[#allocation6 + $0x498] sm:$0xf]
    %v588 = vld [vmem:[#allocation6 + $0x49c] sm:$0xff]
    %v589 = vld [vmem:[#allocation6 + $0x4a4] sm:$0xff]
    %v590 = vld [vmem:[#allocation6 + $0x4ac] sm:$0xf]
    %v591 = vld [vmem:[#allocation6 + $0x4b0] sm:$0xff]
    %v592 = vld [vmem:[#allocation6 + $0x4b8] sm:$0xff]
    %v593 = vld [vmem:[#allocation6 + $0x4c0] sm:$0xf]
    %v594 = vld [vmem:[#allocation6 + $0x4c4] sm:$0xff]
    %v595 = vld [vmem:[#allocation6 + $0x4cc] sm:$0xff]
    %v596 = vld [vmem:[#allocation6 + $0x4d4] sm:$0xf]
    %v597 = vld [vmem:[#allocation6 + $0x4d8] sm:$0xff]
    %v598 = vld [vmem:[#allocation6 + $0x4e0] sm:$0xff]
    %v599 = vld [vmem:[#allocation6 + $0x4e8] sm:$0xf]
    %v600 = vld [vmem:[#allocation6 + $0x4ec] sm:$0xff]
    %v601 = vld [vmem:[#allocation6 + $0x4f4] sm:$0xff]
    %v602 = vld [vmem:[#allocation6 + $0x4fc] sm:$0xf]
    %v603 = vld [vmem:[#allocation6 + $0x500] sm:$0xff]
    %v604 = vld [vmem:[#allocation6 + $0x508] sm:$0xff]
    %v605 = vld [vmem:[#allocation6 + $0x510] sm:$0xf]
    %v606 = vld [vmem:[#allocation6 + $0x514] sm:$0xff]
    %v607 = vld [vmem:[#allocation6 + $0x51c] sm:$0xff]
    %v608 = vld [vmem:[#allocation6 + $0x524] sm:$0xf]
    %v609 = vld [vmem:[#allocation6 + $0x528] sm:$0xff]
    %v610 = vld [vmem:[#allocation6 + $0x530] sm:$0xff]
    %v611 = vld [vmem:[#allocation6 + $0x538] sm:$0xf]
    %v612 = vld [vmem:[#allocation6 + $0x53c] sm:$0xff]
    %v613 = vld [vmem:[#allocation6 + $0x544] sm:$0xff]
    %v614 = vld [vmem:[#allocation6 + $0x54c] sm:$0xf]
    %v615 = vld [vmem:[#allocation6 + $0x550] sm:$0xff]
    %v616 = vld [vmem:[#allocation6 + $0x558] sm:$0xff]
    %v617 = vld [vmem:[#allocation6 + $0x560] sm:$0xf]
    %v618 = vld [vmem:[#allocation6 + $0x564] sm:$0xff]
    %v619 = vld [vmem:[#allocation6 + $0x56c] sm:$0xff]
    %v620 = vld [vmem:[#allocation6 + $0x574] sm:$0xf]
    %v621 = vld [vmem:[#allocation6 + $0x578] sm:$0xff]
    %v622 = vld [vmem:[#allocation6 + $0x580] sm:$0xff]
    %v623 = vld [vmem:[#allocation6 + $0x588] sm:$0xf]
    %v624 = vld [vmem:[#allocation6 + $0x58c] sm:$0xff]
    %v625 = vld [vmem:[#allocation6 + $0x594] sm:$0xff]
    %v626 = vld [vmem:[#allocation6 + $0x59c] sm:$0xf]
    %v627 = vld [vmem:[#allocation6 + $0x5a0] sm:$0xff]
    %v628 = vld [vmem:[#allocation6 + $0x5a8] sm:$0xff]
    %v629 = vld [vmem:[#allocation6 + $0x5b0] sm:$0xf]
    %v630 = vld [vmem:[#allocation6 + $0x5b4] sm:$0xff]
    %v631 = vld [vmem:[#allocation6 + $0x5bc] sm:$0xff]
    %v632 = vld [vmem:[#allocation6 + $0x5c4] sm:$0xf]
    %v633 = vld [vmem:[#allocation6 + $0x5c8] sm:$0xff]
    %v634 = vld [vmem:[#allocation6 + $0x5d0] sm:$0xff]
    %v635 = vld [vmem:[#allocation6 + $0x5d8] sm:$0xf]
    %v636 = vld [vmem:[#allocation6 + $0x5dc] sm:$0xff]
    %v637 = vld [vmem:[#allocation6 + $0x5e4] sm:$0xff]
    %v638 = vld [vmem:[#allocation6 + $0x5ec] sm:$0xf]
    %v639 = vld [vmem:[#allocation6 + $0x5f0] sm:$0xff]
    %v640 = vld [vmem:[#allocation6 + $0x5f8] sm:$0xff]
    %v641 = vld [vmem:[#allocation6 + $0x600] sm:$0xf]
    %v642 = vld [vmem:[#allocation6 + $0x604] sm:$0xff]
    %v643 = vld [vmem:[#allocation6 + $0x60c] sm:$0xff]
    %v644 = vld [vmem:[#allocation6 + $0x614] sm:$0xf]
    %v645 = vld [vmem:[#allocation6 + $0x618] sm:$0xff]
    %v646 = vld [vmem:[#allocation6 + $0x620] sm:$0xff]
    %v647 = vld [vmem:[#allocation6 + $0x628] sm:$0xf]
    %v648 = vld [vmem:[#allocation6 + $0x62c] sm:$0xff]
    %v649 = vld [vmem:[#allocation6 + $0x634] sm:$0xff]
    %v650 = vld [vmem:[#allocation6 + $0x63c] sm:$0xf]
    %v651 = vld [vmem:[#allocation6 + $0x640] sm:$0xff]
    %v652 = vld [vmem:[#allocation6 + $0x648] sm:$0xff]
    %v653 = vld [vmem:[#allocation6 + $0x650] sm:$0xf]
    %v654 = vld [vmem:[#allocation6 + $0x654] sm:$0xff]
    %v655 = vld [vmem:[#allocation6 + $0x65c] sm:$0xff]
    %v656 = vld [vmem:[#allocation6 + $0x664] sm:$0xf]
    %v657 = vld [vmem:[#allocation6 + $0x668] sm:$0xff]
    %v658 = vld [vmem:[#allocation6 + $0x670] sm:$0xff]
    %v659 = vld [vmem:[#allocation6 + $0x678] sm:$0xf]
    %v660 = vld [vmem:[#allocation6 + $0x67c] sm:$0xff]
    %v661 = vld [vmem:[#allocation6 + $0x684] sm:$0xff]
    %v662 = vld [vmem:[#allocation6 + $0x68c] sm:$0xf]
    %v663 = vld [vmem:[#allocation6 + $0x690] sm:$0xff]
    %v664 = vld [vmem:[#allocation6 + $0x698] sm:$0xff]
    %v665 = vld [vmem:[#allocation6 + $0x6a0] sm:$0xf]
    %v666 = vld [vmem:[#allocation6 + $0x6a4] sm:$0xff]
    %v667 = vld [vmem:[#allocation6 + $0x6ac] sm:$0xff]
    %v668 = vld [vmem:[#allocation6 + $0x6b4] sm:$0xf]
    %v669 = vld [vmem:[#allocation6 + $0x6b8] sm:$0xff]
    %v670 = vld [vmem:[#allocation6 + $0x6c0] sm:$0xff]
    %v671 = vld [vmem:[#allocation6 + $0x6c8] sm:$0xf]
    %v672 = vld [vmem:[#allocation6 + $0x6cc] sm:$0xff]
    %v673 = vld [vmem:[#allocation6 + $0x6d4] sm:$0xff]
    %v674 = vld [vmem:[#allocation6 + $0x6dc] sm:$0xf]
    %v675 = vld [vmem:[#allocation6 + $0x6e0] sm:$0xff]
    %v676 = vld [vmem:[#allocation6 + $0x6e8] sm:$0xff]
    %v677 = vld [vmem:[#allocation6 + $0x6f0] sm:$0xf]
    %v678 = vld [vmem:[#allocation6 + $0x6f4] sm:$0xff]
    %v679 = vld [vmem:[#allocation6 + $0x6fc] sm:$0xff]
    %v680 = vld [vmem:[#allocation6 + $0x704] sm:$0xf]
    %v681 = vld [vmem:[#allocation6 + $0x708] sm:$0xff]
    %v682 = vld [vmem:[#allocation6 + $0x710] sm:$0xff]
    %v683 = vld [vmem:[#allocation6 + $0x718] sm:$0xf]
    %v684 = vld [vmem:[#allocation6 + $0x71c] sm:$0xff]
    %v685 = vld [vmem:[#allocation6 + $0x724] sm:$0xff]
    %v686 = vld [vmem:[#allocation6 + $0x72c] sm:$0xf]
    %v687 = vld [vmem:[#allocation6 + $0x730] sm:$0xff]
    %v688 = vld [vmem:[#allocation6 + $0x738] sm:$0xff]
    %v689 = vld [vmem:[#allocation6 + $0x740] sm:$0xf]
    %v690 = vld [vmem:[#allocation6 + $0x744] sm:$0xff]
    %v691 = vld [vmem:[#allocation6 + $0x74c] sm:$0xff]
    %v692 = vld [vmem:[#allocation6 + $0x754] sm:$0xf]
    %v693 = vld [vmem:[#allocation6 + $0x758] sm:$0xff]
    %v694 = vld [vmem:[#allocation6 + $0x760] sm:$0xff]
    %v695 = vld [vmem:[#allocation6 + $0x768] sm:$0xf]
    %v696 = vld [vmem:[#allocation6 + $0x76c] sm:$0xff]
    %v697 = vld [vmem:[#allocation6 + $0x774] sm:$0xff]
    %v698 = vld [vmem:[#allocation6 + $0x77c] sm:$0xf]
    %v699 = vld [vmem:[#allocation6 + $0x780] sm:$0xff]
    %v700 = vld [vmem:[#allocation6 + $0x788] sm:$0xff]
    %v701 = vld [vmem:[#allocation6 + $0x790] sm:$0xf]
    %v702 = vld [vmem:[#allocation6 + $0x794] sm:$0xff]
    %v703 = vld [vmem:[#allocation6 + $0x79c] sm:$0xff]
    %v704 = vld [vmem:[#allocation6 + $0x7a4] sm:$0xf]
    %v705 = vld [vmem:[#allocation6 + $0x7a8] sm:$0xff]
    %v706 = vld [vmem:[#allocation6 + $0x7b0] sm:$0xff]
    %v707 = vld [vmem:[#allocation6 + $0x7b8] sm:$0xf]
    %v708 = vld [vmem:[#allocation6 + $0x7bc] sm:$0xff]
    %v709 = vld [vmem:[#allocation6 + $0x7c4] sm:$0xff]
    %v710 = vld [vmem:[#allocation6 + $0x7cc] sm:$0xf]
    %v711 = vld [vmem:[#allocation6 + $0x7d0] sm:$0xff]
    %v712 = vld [vmem:[#allocation6 + $0x7d8] sm:$0xff]
    %v713 = vld [vmem:[#allocation6 + $0x7e0] sm:$0xf]
    %v714 = vld [vmem:[#allocation6 + $0x7e4] sm:$0xff]
    %v715 = vld [vmem:[#allocation6 + $0x7ec] sm:$0xff]
    %v716 = vld [vmem:[#allocation6 + $0x7f4] sm:$0xf]
    %v717 = vld [vmem:[#allocation6 + $0x7f8] sm:$0xff]
    %v718 = vld [vmem:[#allocation6 + $0x800] sm:$0xff]
    %v719 = vld [vmem:[#allocation6 + $0x808] sm:$0xf]
    %v720 = vld [vmem:[#allocation6 + $0x80c] sm:$0xff]
    %v721 = vld [vmem:[#allocation6 + $0x814] sm:$0xff]
    %v722 = vld [vmem:[#allocation6 + $0x81c] sm:$0xf]
    %v723 = vld [vmem:[#allocation6 + $0x820] sm:$0xff]
    %v724 = vld [vmem:[#allocation6 + $0x828] sm:$0xff]
    %v725 = vld [vmem:[#allocation6 + $0x830] sm:$0xf]
    %v726 = vld [vmem:[#allocation6 + $0x834] sm:$0xff]
    %v727 = vld [vmem:[#allocation6 + $0x83c] sm:$0xff]
    %v728 = vld [vmem:[#allocation6 + $0x844] sm:$0xf]
    %v729 = vld [vmem:[#allocation6 + $0x848] sm:$0xff]
    %v730 = vld [vmem:[#allocation6 + $0x850] sm:$0xff]
    %v731 = vld [vmem:[#allocation6 + $0x858] sm:$0xf]
    %v732 = vld [vmem:[#allocation6 + $0x85c] sm:$0xff]
    %v733 = vld [vmem:[#allocation6 + $0x864] sm:$0xff]
    %v734 = vld [vmem:[#allocation6 + $0x86c] sm:$0xf]
    %v735 = vld [vmem:[#allocation6 + $0x870] sm:$0xff]
    %v736 = vld [vmem:[#allocation6 + $0x878] sm:$0xff]
    %v737 = vld [vmem:[#allocation6 + $0x880] sm:$0xf]
    %v738 = vld [vmem:[#allocation6 + $0x884] sm:$0xff]
    %v739 = vld [vmem:[#allocation6 + $0x88c] sm:$0xff]
    %v740 = vld [vmem:[#allocation6 + $0x894] sm:$0xf]
    %v741 = vld [vmem:[#allocation6 + $0x898] sm:$0xff]
    %v742 = vld [vmem:[#allocation6 + $0x8a0] sm:$0xff]
    %v743 = vld [vmem:[#allocation6 + $0x8a8] sm:$0xf]
    %v744 = vld [vmem:[#allocation6 + $0x8ac] sm:$0xff]
    %v745 = vld [vmem:[#allocation6 + $0x8b4] sm:$0xff]
    %v746 = vld [vmem:[#allocation6 + $0x8bc] sm:$0xf]
    %v747 = vld [vmem:[#allocation7] sm:$0x1f]
    %v749 = vlaneseq
    %v750 = vshrl.u32 %v749, 7
    %v751 = vsub.s32 0, %v750
    %v752 = vrot.slane %v747, %v751
    %v753 = vlaneseq
    %v754 = vshrl.u32 %v753, 7
    %v755 = vsub.s32 1, %v754
    %v756 = vrot.slane %v747, %v755
    %v757 = vlaneseq
    %v758 = vshrl.u32 %v757, 7
    %v759 = vsub.s32 2, %v758
    %v760 = vrot.slane %v747, %v759
    %v761 = vlaneseq
    %v762 = vshrl.u32 %v761, 7
    %v763 = vsub.s32 3, %v762
    %v764 = vrot.slane %v747, %v763
    %v765 = vlaneseq
    %v766 = vshrl.u32 %v765, 7
    %v767 = vsub.s32 4, %v766
    %v768 = vrot.slane %v747, %v767
    %v1110 = vunpack.c.l.b16 %v411
    %v1111 = vunpack.c.h.b16 %v411
    %v1112 = vunpack.c.l.b16 %v412
    %v1113 = vunpack.c.h.b16 %v412
    %v1114 = vunpack.c.l.b16 %v413
    %v1115 = vunpack.c.l.b16 %v414
    %v1116 = vunpack.c.h.b16 %v414
    %v1117 = vunpack.c.l.b16 %v415
    %v1118 = vunpack.c.h.b16 %v415
    %v1119 = vunpack.c.l.b16 %v416
    %v1120 = vunpack.c.l.b16 %v417
    %v1121 = vunpack.c.h.b16 %v417
    %v1122 = vunpack.c.l.b16 %v418
    %v1123 = vunpack.c.h.b16 %v418
    %v1124 = vunpack.c.l.b16 %v419
    %v1125 = vunpack.c.l.b16 %v420
    %v1126 = vunpack.c.h.b16 %v420
    %v1127 = vunpack.c.l.b16 %v421
    %v1128 = vunpack.c.h.b16 %v421
    %v1129 = vunpack.c.l.b16 %v422
    %v1130 = vunpack.c.l.b16 %v423
    %v1131 = vunpack.c.h.b16 %v423
    %v1132 = vunpack.c.l.b16 %v424
    %v1133 = vunpack.c.h.b16 %v424
    %v1134 = vunpack.c.l.b16 %v425
    %v1135 = vunpack.c.l.b16 %v426
    %v1136 = vunpack.c.h.b16 %v426
    %v1137 = vunpack.c.l.b16 %v427
    %v1138 = vunpack.c.h.b16 %v427
    %v1139 = vunpack.c.l.b16 %v428
    %v1140 = vunpack.c.l.b16 %v429
    %v1141 = vunpack.c.h.b16 %v429
    %v1142 = vunpack.c.l.b16 %v430
    %v1143 = vunpack.c.h.b16 %v430
    %v1144 = vunpack.c.l.b16 %v431
    %v1145 = vunpack.c.l.b16 %v432
    %v1146 = vunpack.c.h.b16 %v432
    %v1147 = vunpack.c.l.b16 %v433
    %v1148 = vunpack.c.h.b16 %v433
    %v1149 = vunpack.c.l.b16 %v434
    %v1150 = vunpack.c.l.b16 %v435
    %v1151 = vunpack.c.h.b16 %v435
    %v1152 = vunpack.c.l.b16 %v436
    %v1153 = vunpack.c.h.b16 %v436
    %v1154 = vunpack.c.l.b16 %v437
    %v1155 = vunpack.c.l.b16 %v438
    %v1156 = vunpack.c.h.b16 %v438
    %v1157 = vunpack.c.l.b16 %v439
    %v1158 = vunpack.c.h.b16 %v439
    %v1159 = vunpack.c.l.b16 %v440
    %v1160 = vunpack.c.l.b16 %v441
    %v1161 = vunpack.c.h.b16 %v441
    %v1162 = vunpack.c.l.b16 %v442
    %v1163 = vunpack.c.h.b16 %v442
    %v1164 = vunpack.c.l.b16 %v443
    %v1165 = vunpack.c.l.b16 %v444
    %v1166 = vunpack.c.h.b16 %v444
    %v1167 = vunpack.c.l.b16 %v445
    %v1168 = vunpack.c.h.b16 %v445
    %v1169 = vunpack.c.l.b16 %v446
    %v1170 = vunpack.c.l.b16 %v447
    %v1171 = vunpack.c.h.b16 %v447
    %v1172 = vunpack.c.l.b16 %v448
    %v1173 = vunpack.c.h.b16 %v448
    %v1174 = vunpack.c.l.b16 %v449
    %v1175 = vunpack.c.l.b16 %v450
    %v1176 = vunpack.c.h.b16 %v450
    %v1177 = vunpack.c.l.b16 %v451
    %v1178 = vunpack.c.h.b16 %v451
    %v1179 = vunpack.c.l.b16 %v452
    %v1180 = vunpack.c.l.b16 %v453
    %v1181 = vunpack.c.h.b16 %v453
    %v1182 = vunpack.c.l.b16 %v454
    %v1183 = vunpack.c.h.b16 %v454
    %v1184 = vunpack.c.l.b16 %v455
    %v1185 = vunpack.c.l.b16 %v456
    %v1186 = vunpack.c.h.b16 %v456
    %v1187 = vunpack.c.l.b16 %v457
    %v1188 = vunpack.c.h.b16 %v457
    %v1189 = vunpack.c.l.b16 %v458
    %v1190 = vunpack.c.l.b16 %v459
    %v1191 = vunpack.c.h.b16 %v459
    %v1192 = vunpack.c.l.b16 %v460
    %v1193 = vunpack.c.h.b16 %v460
    %v1194 = vunpack.c.l.b16 %v461
    %v1195 = vunpack.c.l.b16 %v462
    %v1196 = vunpack.c.h.b16 %v462
    %v1197 = vunpack.c.l.b16 %v463
    %v1198 = vunpack.c.h.b16 %v463
    %v1199 = vunpack.c.l.b16 %v464
    %v1200 = vunpack.c.l.b16 %v465
    %v1201 = vunpack.c.h.b16 %v465
    %v1202 = vunpack.c.l.b16 %v466
    %v1203 = vunpack.c.h.b16 %v466
    %v1204 = vunpack.c.l.b16 %v467
    %v1205 = vunpack.c.l.b16 %v468
    %v1206 = vunpack.c.h.b16 %v468
    %v1207 = vunpack.c.l.b16 %v469
    %v1208 = vunpack.c.h.b16 %v469
    %v1209 = vunpack.c.l.b16 %v470
    %v1210 = vunpack.c.l.b16 %v471
    %v1211 = vunpack.c.h.b16 %v471
    %v1212 = vunpack.c.l.b16 %v472
    %v1213 = vunpack.c.h.b16 %v472
    %v1214 = vunpack.c.l.b16 %v473
    %v1215 = vunpack.c.l.b16 %v474
    %v1216 = vunpack.c.h.b16 %v474
    %v1217 = vunpack.c.l.b16 %v475
    %v1218 = vunpack.c.h.b16 %v475
    %v1219 = vunpack.c.l.b16 %v476
    %v1220 = vunpack.c.l.b16 %v477
    %v1221 = vunpack.c.h.b16 %v477
    %v1222 = vunpack.c.l.b16 %v478
    %v1223 = vunpack.c.h.b16 %v478
    %v1224 = vunpack.c.l.b16 %v479
    %v1225 = vunpack.c.l.b16 %v480
    %v1226 = vunpack.c.h.b16 %v480
    %v1227 = vunpack.c.l.b16 %v481
    %v1228 = vunpack.c.h.b16 %v481
    %v1229 = vunpack.c.l.b16 %v482
    %v1230 = vunpack.c.l.b16 %v483
    %v1231 = vunpack.c.h.b16 %v483
    %v1232 = vunpack.c.l.b16 %v484
    %v1233 = vunpack.c.h.b16 %v484
    %v1234 = vunpack.c.l.b16 %v485
    %v1235 = vunpack.c.l.b16 %v486
    %v1236 = vunpack.c.h.b16 %v486
    %v1237 = vunpack.c.l.b16 %v487
    %v1238 = vunpack.c.h.b16 %v487
    %v1239 = vunpack.c.l.b16 %v488
    %v1240 = vunpack.c.l.b16 %v489
    %v1241 = vunpack.c.h.b16 %v489
    %v1242 = vunpack.c.l.b16 %v490
    %v1243 = vunpack.c.h.b16 %v490
    %v1244 = vunpack.c.l.b16 %v491
    %v1245 = vunpack.c.l.b16 %v492
    %v1246 = vunpack.c.h.b16 %v492
    %v1247 = vunpack.c.l.b16 %v493
    %v1248 = vunpack.c.h.b16 %v493
    %v1249 = vunpack.c.l.b16 %v494
    %v1250 = vunpack.c.l.b16 %v495
    %v1251 = vunpack.c.h.b16 %v495
    %v1252 = vunpack.c.l.b16 %v496
    %v1253 = vunpack.c.h.b16 %v496
    %v1254 = vunpack.c.l.b16 %v497
    %v1255 = vunpack.c.l.b16 %v498
    %v1256 = vunpack.c.h.b16 %v498
    %v1257 = vunpack.c.l.b16 %v499
    %v1258 = vunpack.c.h.b16 %v499
    %v1259 = vunpack.c.l.b16 %v500
    %v1260 = vunpack.c.l.b16 %v501
    %v1261 = vunpack.c.h.b16 %v501
    %v1262 = vunpack.c.l.b16 %v502
    %v1263 = vunpack.c.h.b16 %v502
    %v1264 = vunpack.c.l.b16 %v503
    %v1265 = vunpack.c.l.b16 %v504
    %v1266 = vunpack.c.h.b16 %v504
    %v1267 = vunpack.c.l.b16 %v505
    %v1268 = vunpack.c.h.b16 %v505
    %v1269 = vunpack.c.l.b16 %v506
    %v1270 = vunpack.c.l.b16 %v507
    %v1271 = vunpack.c.h.b16 %v507
    %v1272 = vunpack.c.l.b16 %v508
    %v1273 = vunpack.c.h.b16 %v508
    %v1274 = vunpack.c.l.b16 %v509
    %v1275 = vunpack.c.l.b16 %v510
    %v1276 = vunpack.c.h.b16 %v510
    %v1277 = vunpack.c.l.b16 %v511
    %v1278 = vunpack.c.h.b16 %v511
    %v1279 = vunpack.c.l.b16 %v512
    %v1280 = vunpack.c.l.b16 %v513
    %v1281 = vunpack.c.h.b16 %v513
    %v1282 = vunpack.c.l.b16 %v514
    %v1283 = vunpack.c.h.b16 %v514
    %v1284 = vunpack.c.l.b16 %v515
    %v1285 = vunpack.c.l.b16 %v516
    %v1286 = vunpack.c.h.b16 %v516
    %v1287 = vunpack.c.l.b16 %v517
    %v1288 = vunpack.c.h.b16 %v517
    %v1289 = vunpack.c.l.b16 %v518
    %v1290 = vunpack.c.l.b16 %v519
    %v1291 = vunpack.c.h.b16 %v519
    %v1292 = vunpack.c.l.b16 %v520
    %v1293 = vunpack.c.h.b16 %v520
    %v1294 = vunpack.c.l.b16 %v521
    %v1295 = vunpack.c.l.b16 %v522
    %v1296 = vunpack.c.h.b16 %v522
    %v1297 = vunpack.c.l.b16 %v523
    %v1298 = vunpack.c.h.b16 %v523
    %v1299 = vunpack.c.l.b16 %v524
    %v1300 = vunpack.c.l.b16 %v525
    %v1301 = vunpack.c.h.b16 %v525
    %v1302 = vunpack.c.l.b16 %v526
    %v1303 = vunpack.c.h.b16 %v526
    %v1304 = vunpack.c.l.b16 %v527
    %v1305 = vunpack.c.l.b16 %v528
    %v1306 = vunpack.c.h.b16 %v528
    %v1307 = vunpack.c.l.b16 %v529
    %v1308 = vunpack.c.h.b16 %v529
    %v1309 = vunpack.c.l.b16 %v530
    %v1310 = vunpack.c.l.b16 %v531
    %v1311 = vunpack.c.h.b16 %v531
    %v1312 = vunpack.c.l.b16 %v532
    %v1313 = vunpack.c.h.b16 %v532
    %v1314 = vunpack.c.l.b16 %v533
    %v1315 = vunpack.c.l.b16 %v534
    %v1316 = vunpack.c.h.b16 %v534
    %v1317 = vunpack.c.l.b16 %v535
    %v1318 = vunpack.c.h.b16 %v535
    %v1319 = vunpack.c.l.b16 %v536
    %v1320 = vunpack.c.l.b16 %v537
    %v1321 = vunpack.c.h.b16 %v537
    %v1322 = vunpack.c.l.b16 %v538
    %v1323 = vunpack.c.h.b16 %v538
    %v1324 = vunpack.c.l.b16 %v539
    %v1325 = vunpack.c.l.b16 %v540
    %v1326 = vunpack.c.h.b16 %v540
    %v1327 = vunpack.c.l.b16 %v541
    %v1328 = vunpack.c.h.b16 %v541
    %v1329 = vunpack.c.l.b16 %v542
    %v1330 = vunpack.c.l.b16 %v543
    %v1331 = vunpack.c.h.b16 %v543
    %v1332 = vunpack.c.l.b16 %v544
    %v1333 = vunpack.c.h.b16 %v544
    %v1334 = vunpack.c.l.b16 %v545
    %v1335 = vunpack.c.l.b16 %v546
    %v1336 = vunpack.c.h.b16 %v546
    %v1337 = vunpack.c.l.b16 %v547
    %v1338 = vunpack.c.h.b16 %v547
    %v1339 = vunpack.c.l.b16 %v548
    %v1340 = vunpack.c.l.b16 %v549
    %v1341 = vunpack.c.h.b16 %v549
    %v1342 = vunpack.c.l.b16 %v550
    %v1343 = vunpack.c.h.b16 %v550
    %v1344 = vunpack.c.l.b16 %v551
    %v1345 = vunpack.c.l.b16 %v552
    %v1346 = vunpack.c.h.b16 %v552
    %v1347 = vunpack.c.l.b16 %v553
    %v1348 = vunpack.c.h.b16 %v553
    %v1349 = vunpack.c.l.b16 %v554
    %v1350 = vunpack.c.l.b16 %v555
    %v1351 = vunpack.c.h.b16 %v555
    %v1352 = vunpack.c.l.b16 %v556
    %v1353 = vunpack.c.h.b16 %v556
    %v1354 = vunpack.c.l.b16 %v557
    %v1355 = vunpack.c.l.b16 %v558
    %v1356 = vunpack.c.h.b16 %v558
    %v1357 = vunpack.c.l.b16 %v559
    %v1358 = vunpack.c.h.b16 %v559
    %v1359 = vunpack.c.l.b16 %v560
    %v1360 = vunpack.c.l.b16 %v561
    %v1361 = vunpack.c.h.b16 %v561
    %v1362 = vunpack.c.l.b16 %v562
    %v1363 = vunpack.c.h.b16 %v562
    %v1364 = vunpack.c.l.b16 %v563
    %v1365 = vunpack.c.l.b16 %v564
    %v1366 = vunpack.c.h.b16 %v564
    %v1367 = vunpack.c.l.b16 %v565
    %v1368 = vunpack.c.h.b16 %v565
    %v1369 = vunpack.c.l.b16 %v566
    %v1370 = vunpack.c.l.b16 %v567
    %v1371 = vunpack.c.h.b16 %v567
    %v1372 = vunpack.c.l.b16 %v568
    %v1373 = vunpack.c.h.b16 %v568
    %v1374 = vunpack.c.l.b16 %v569
    %v1375 = vunpack.c.l.b16 %v570
    %v1376 = vunpack.c.h.b16 %v570
    %v1377 = vunpack.c.l.b16 %v571
    %v1378 = vunpack.c.h.b16 %v571
    %v1379 = vunpack.c.l.b16 %v572
    %v1380 = vunpack.c.l.b16 %v573
    %v1381 = vunpack.c.h.b16 %v573
    %v1382 = vunpack.c.l.b16 %v574
    %v1383 = vunpack.c.h.b16 %v574
    %v1384 = vunpack.c.l.b16 %v575
    %v1385 = vunpack.c.l.b16 %v576
    %v1386 = vunpack.c.h.b16 %v576
    %v1387 = vunpack.c.l.b16 %v577
    %v1388 = vunpack.c.h.b16 %v577
    %v1389 = vunpack.c.l.b16 %v578
    %v1390 = vunpack.c.l.b16 %v579
    %v1391 = vunpack.c.h.b16 %v579
    %v1392 = vunpack.c.l.b16 %v580
    %v1393 = vunpack.c.h.b16 %v580
    %v1394 = vunpack.c.l.b16 %v581
    %v1395 = vunpack.c.l.b16 %v582
    %v1396 = vunpack.c.h.b16 %v582
    %v1397 = vunpack.c.l.b16 %v583
    %v1398 = vunpack.c.h.b16 %v583
    %v1399 = vunpack.c.l.b16 %v584
    %v1400 = vunpack.c.l.b16 %v585
    %v1401 = vunpack.c.h.b16 %v585
    %v1402 = vunpack.c.l.b16 %v586
    %v1403 = vunpack.c.h.b16 %v586
    %v1404 = vunpack.c.l.b16 %v587
    %v1405 = vunpack.c.l.b16 %v588
    %v1406 = vunpack.c.h.b16 %v588
    %v1407 = vunpack.c.l.b16 %v589
    %v1408 = vunpack.c.h.b16 %v589
    %v1409 = vunpack.c.l.b16 %v590
    %v1410 = vunpack.c.l.b16 %v591
    %v1411 = vunpack.c.h.b16 %v591
    %v1412 = vunpack.c.l.b16 %v592
    %v1413 = vunpack.c.h.b16 %v592
    %v1414 = vunpack.c.l.b16 %v593
    %v1415 = vunpack.c.l.b16 %v594
    %v1416 = vunpack.c.h.b16 %v594
    %v1417 = vunpack.c.l.b16 %v595
    %v1418 = vunpack.c.h.b16 %v595
    %v1419 = vunpack.c.l.b16 %v596
    %v1420 = vunpack.c.l.b16 %v597
    %v1421 = vunpack.c.h.b16 %v597
    %v1422 = vunpack.c.l.b16 %v598
    %v1423 = vunpack.c.h.b16 %v598
    %v1424 = vunpack.c.l.b16 %v599
    %v1425 = vunpack.c.l.b16 %v600
    %v1426 = vunpack.c.h.b16 %v600
    %v1427 = vunpack.c.l.b16 %v601
    %v1428 = vunpack.c.h.b16 %v601
    %v1429 = vunpack.c.l.b16 %v602
    %v1430 = vunpack.c.l.b16 %v603
    %v1431 = vunpack.c.h.b16 %v603
    %v1432 = vunpack.c.l.b16 %v604
    %v1433 = vunpack.c.h.b16 %v604
    %v1434 = vunpack.c.l.b16 %v605
    %v1435 = vunpack.c.l.b16 %v606
    %v1436 = vunpack.c.h.b16 %v606
    %v1437 = vunpack.c.l.b16 %v607
    %v1438 = vunpack.c.h.b16 %v607
    %v1439 = vunpack.c.l.b16 %v608
    %v1440 = vunpack.c.l.b16 %v609
    %v1441 = vunpack.c.h.b16 %v609
    %v1442 = vunpack.c.l.b16 %v610
    %v1443 = vunpack.c.h.b16 %v610
    %v1444 = vunpack.c.l.b16 %v611
    %v1445 = vunpack.c.l.b16 %v612
    %v1446 = vunpack.c.h.b16 %v612
    %v1447 = vunpack.c.l.b16 %v613
    %v1448 = vunpack.c.h.b16 %v613
    %v1449 = vunpack.c.l.b16 %v614
    %v1450 = vunpack.c.l.b16 %v615
    %v1451 = vunpack.c.h.b16 %v615
    %v1452 = vunpack.c.l.b16 %v616
    %v1453 = vunpack.c.h.b16 %v616
    %v1454 = vunpack.c.l.b16 %v617
    %v1455 = vunpack.c.l.b16 %v618
    %v1456 = vunpack.c.h.b16 %v618
    %v1457 = vunpack.c.l.b16 %v619
    %v1458 = vunpack.c.h.b16 %v619
    %v1459 = vunpack.c.l.b16 %v620
    %v1460 = vunpack.c.l.b16 %v621
    %v1461 = vunpack.c.h.b16 %v621
    %v1462 = vunpack.c.l.b16 %v622
    %v1463 = vunpack.c.h.b16 %v622
    %v1464 = vunpack.c.l.b16 %v623
    %v1465 = vunpack.c.l.b16 %v624
    %v1466 = vunpack.c.h.b16 %v624
    %v1467 = vunpack.c.l.b16 %v625
    %v1468 = vunpack.c.h.b16 %v625
    %v1469 = vunpack.c.l.b16 %v626
    %v1470 = vunpack.c.l.b16 %v627
    %v1471 = vunpack.c.h.b16 %v627
    %v1472 = vunpack.c.l.b16 %v628
    %v1473 = vunpack.c.h.b16 %v628
    %v1474 = vunpack.c.l.b16 %v629
    %v1475 = vunpack.c.l.b16 %v630
    %v1476 = vunpack.c.h.b16 %v630
    %v1477 = vunpack.c.l.b16 %v631
    %v1478 = vunpack.c.h.b16 %v631
    %v1479 = vunpack.c.l.b16 %v632
    %v1480 = vunpack.c.l.b16 %v633
    %v1481 = vunpack.c.h.b16 %v633
    %v1482 = vunpack.c.l.b16 %v634
    %v1483 = vunpack.c.h.b16 %v634
    %v1484 = vunpack.c.l.b16 %v635
    %v1485 = vunpack.c.l.b16 %v636
    %v1486 = vunpack.c.h.b16 %v636
    %v1487 = vunpack.c.l.b16 %v637
    %v1488 = vunpack.c.h.b16 %v637
    %v1489 = vunpack.c.l.b16 %v638
    %v1490 = vunpack.c.l.b16 %v639
    %v1491 = vunpack.c.h.b16 %v639
    %v1492 = vunpack.c.l.b16 %v640
    %v1493 = vunpack.c.h.b16 %v640
    %v1494 = vunpack.c.l.b16 %v641
    %v1495 = vunpack.c.l.b16 %v642
    %v1496 = vunpack.c.h.b16 %v642
    %v1497 = vunpack.c.l.b16 %v643
    %v1498 = vunpack.c.h.b16 %v643
    %v1499 = vunpack.c.l.b16 %v644
    %v1500 = vunpack.c.l.b16 %v645
    %v1501 = vunpack.c.h.b16 %v645
    %v1502 = vunpack.c.l.b16 %v646
    %v1503 = vunpack.c.h.b16 %v646
    %v1504 = vunpack.c.l.b16 %v647
    %v1505 = vunpack.c.l.b16 %v648
    %v1506 = vunpack.c.h.b16 %v648
    %v1507 = vunpack.c.l.b16 %v649
    %v1508 = vunpack.c.h.b16 %v649
    %v1509 = vunpack.c.l.b16 %v650
    %v1510 = vunpack.c.l.b16 %v651
    %v1511 = vunpack.c.h.b16 %v651
    %v1512 = vunpack.c.l.b16 %v652
    %v1513 = vunpack.c.h.b16 %v652
    %v1514 = vunpack.c.l.b16 %v653
    %v1515 = vunpack.c.l.b16 %v654
    %v1516 = vunpack.c.h.b16 %v654
    %v1517 = vunpack.c.l.b16 %v655
    %v1518 = vunpack.c.h.b16 %v655
    %v1519 = vunpack.c.l.b16 %v656
    %v1520 = vunpack.c.l.b16 %v657
    %v1521 = vunpack.c.h.b16 %v657
    %v1522 = vunpack.c.l.b16 %v658
    %v1523 = vunpack.c.h.b16 %v658
    %v1524 = vunpack.c.l.b16 %v659
    %v1525 = vunpack.c.l.b16 %v660
    %v1526 = vunpack.c.h.b16 %v660
    %v1527 = vunpack.c.l.b16 %v661
    %v1528 = vunpack.c.h.b16 %v661
    %v1529 = vunpack.c.l.b16 %v662
    %v1530 = vunpack.c.l.b16 %v663
    %v1531 = vunpack.c.h.b16 %v663
    %v1532 = vunpack.c.l.b16 %v664
    %v1533 = vunpack.c.h.b16 %v664
    %v1534 = vunpack.c.l.b16 %v665
    %v1535 = vunpack.c.l.b16 %v666
    %v1536 = vunpack.c.h.b16 %v666
    %v1537 = vunpack.c.l.b16 %v667
    %v1538 = vunpack.c.h.b16 %v667
    %v1539 = vunpack.c.l.b16 %v668
    %v1540 = vunpack.c.l.b16 %v669
    %v1541 = vunpack.c.h.b16 %v669
    %v1542 = vunpack.c.l.b16 %v670
    %v1543 = vunpack.c.h.b16 %v670
    %v1544 = vunpack.c.l.b16 %v671
    %v1545 = vunpack.c.l.b16 %v672
    %v1546 = vunpack.c.h.b16 %v672
    %v1547 = vunpack.c.l.b16 %v673
    %v1548 = vunpack.c.h.b16 %v673
    %v1549 = vunpack.c.l.b16 %v674
    %v1550 = vunpack.c.l.b16 %v675
    %v1551 = vunpack.c.h.b16 %v675
    %v1552 = vunpack.c.l.b16 %v676
    %v1553 = vunpack.c.h.b16 %v676
    %v1554 = vunpack.c.l.b16 %v677
    %v1555 = vunpack.c.l.b16 %v678
    %v1556 = vunpack.c.h.b16 %v678
    %v1557 = vunpack.c.l.b16 %v679
    %v1558 = vunpack.c.h.b16 %v679
    %v1559 = vunpack.c.l.b16 %v680
    %v1560 = vunpack.c.l.b16 %v681
    %v1561 = vunpack.c.h.b16 %v681
    %v1562 = vunpack.c.l.b16 %v682
    %v1563 = vunpack.c.h.b16 %v682
    %v1564 = vunpack.c.l.b16 %v683
    %v1565 = vunpack.c.l.b16 %v684
    %v1566 = vunpack.c.h.b16 %v684
    %v1567 = vunpack.c.l.b16 %v685
    %v1568 = vunpack.c.h.b16 %v685
    %v1569 = vunpack.c.l.b16 %v686
    %v1570 = vunpack.c.l.b16 %v687
    %v1571 = vunpack.c.h.b16 %v687
    %v1572 = vunpack.c.l.b16 %v688
    %v1573 = vunpack.c.h.b16 %v688
    %v1574 = vunpack.c.l.b16 %v689
    %v1575 = vunpack.c.l.b16 %v690
    %v1576 = vunpack.c.h.b16 %v690
    %v1577 = vunpack.c.l.b16 %v691
    %v1578 = vunpack.c.h.b16 %v691
    %v1579 = vunpack.c.l.b16 %v692
    %v1580 = vunpack.c.l.b16 %v693
    %v1581 = vunpack.c.h.b16 %v693
    %v1582 = vunpack.c.l.b16 %v694
    %v1583 = vunpack.c.h.b16 %v694
    %v1584 = vunpack.c.l.b16 %v695
    %v1585 = vunpack.c.l.b16 %v696
    %v1586 = vunpack.c.h.b16 %v696
    %v1587 = vunpack.c.l.b16 %v697
    %v1588 = vunpack.c.h.b16 %v697
    %v1589 = vunpack.c.l.b16 %v698
    %v1590 = vunpack.c.l.b16 %v699
    %v1591 = vunpack.c.h.b16 %v699
    %v1592 = vunpack.c.l.b16 %v700
    %v1593 = vunpack.c.h.b16 %v700
    %v1594 = vunpack.c.l.b16 %v701
    %v1595 = vunpack.c.l.b16 %v702
    %v1596 = vunpack.c.h.b16 %v702
    %v1597 = vunpack.c.l.b16 %v703
    %v1598 = vunpack.c.h.b16 %v703
    %v1599 = vunpack.c.l.b16 %v704
    %v1600 = vunpack.c.l.b16 %v705
    %v1601 = vunpack.c.h.b16 %v705
    %v1602 = vunpack.c.l.b16 %v706
    %v1603 = vunpack.c.h.b16 %v706
    %v1604 = vunpack.c.l.b16 %v707
    %v1605 = vunpack.c.l.b16 %v708
    %v1606 = vunpack.c.h.b16 %v708
    %v1607 = vunpack.c.l.b16 %v709
    %v1608 = vunpack.c.h.b16 %v709
    %v1609 = vunpack.c.l.b16 %v710
    %v1610 = vunpack.c.l.b16 %v711
    %v1611 = vunpack.c.h.b16 %v711
    %v1612 = vunpack.c.l.b16 %v712
    %v1613 = vunpack.c.h.b16 %v712
    %v1614 = vunpack.c.l.b16 %v713
    %v1615 = vunpack.c.l.b16 %v714
    %v1616 = vunpack.c.h.b16 %v714
    %v1617 = vunpack.c.l.b16 %v715
    %v1618 = vunpack.c.h.b16 %v715
    %v1619 = vunpack.c.l.b16 %v716
    %v1620 = vunpack.c.l.b16 %v717
    %v1621 = vunpack.c.h.b16 %v717
    %v1622 = vunpack.c.l.b16 %v718
    %v1623 = vunpack.c.h.b16 %v718
    %v1624 = vunpack.c.l.b16 %v719
    %v1625 = vunpack.c.l.b16 %v720
    %v1626 = vunpack.c.h.b16 %v720
    %v1627 = vunpack.c.l.b16 %v721
    %v1628 = vunpack.c.h.b16 %v721
    %v1629 = vunpack.c.l.b16 %v722
    %v1630 = vunpack.c.l.b16 %v723
    %v1631 = vunpack.c.h.b16 %v723
    %v1632 = vunpack.c.l.b16 %v724
    %v1633 = vunpack.c.h.b16 %v724
    %v1634 = vunpack.c.l.b16 %v725
    %v1635 = vunpack.c.l.b16 %v726
    %v1636 = vunpack.c.h.b16 %v726
    %v1637 = vunpack.c.l.b16 %v727
    %v1638 = vunpack.c.h.b16 %v727
    %v1639 = vunpack.c.l.b16 %v728
    %v1640 = vunpack.c.l.b16 %v729
    %v1641 = vunpack.c.h.b16 %v729
    %v1642 = vunpack.c.l.b16 %v730
    %v1643 = vunpack.c.h.b16 %v730
    %v1644 = vunpack.c.l.b16 %v731
    %v1645 = vunpack.c.l.b16 %v732
    %v1646 = vunpack.c.h.b16 %v732
    %v1647 = vunpack.c.l.b16 %v733
    %v1648 = vunpack.c.h.b16 %v733
    %v1649 = vunpack.c.l.b16 %v734
    %v1650 = vunpack.c.l.b16 %v735
    %v1651 = vunpack.c.h.b16 %v735
    %v1652 = vunpack.c.l.b16 %v736
    %v1653 = vunpack.c.h.b16 %v736
    %v1654 = vunpack.c.l.b16 %v737
    %v1655 = vunpack.c.l.b16 %v738
    %v1656 = vunpack.c.h.b16 %v738
    %v1657 = vunpack.c.l.b16 %v739
    %v1658 = vunpack.c.h.b16 %v739
    %v1659 = vunpack.c.l.b16 %v740
    %v1660 = vunpack.c.l.b16 %v741
    %v1661 = vunpack.c.h.b16 %v741
    %v1662 = vunpack.c.l.b16 %v742
    %v1663 = vunpack.c.h.b16 %v742
    %v1664 = vunpack.c.l.b16 %v743
    %v1665 = vunpack.c.l.b16 %v744
    %v1666 = vunpack.c.h.b16 %v744
    %v1667 = vunpack.c.l.b16 %v745
    %v1668 = vunpack.c.h.b16 %v745
    %v1669 = vunpack.c.l.b16 %v746
    %v1670 = vpack.c.b16 %v1115, %v1110
    %v1671 = vpack.c.b16 %v1116, %v1111
    %v1672 = vpack.c.b16 %v1117, %v1112
    %v1673 = vpack.c.b16 %v1118, %v1113
    %v1674 = vpack.c.b16 %v1119, %v1114
    %v1675 = vpack.c.b16 %v1125, %v1120
    %v1676 = vpack.c.b16 %v1126, %v1121
    %v1677 = vpack.c.b16 %v1127, %v1122
    %v1678 = vpack.c.b16 %v1128, %v1123
    %v1679 = vpack.c.b16 %v1129, %v1124
    %v1680 = vpack.c.b16 %v1135, %v1130
    %v1681 = vpack.c.b16 %v1136, %v1131
    %v1682 = vpack.c.b16 %v1137, %v1132
    %v1683 = vpack.c.b16 %v1138, %v1133
    %v1684 = vpack.c.b16 %v1139, %v1134
    %v1685 = vpack.c.b16 %v1145, %v1140
    %v1686 = vpack.c.b16 %v1146, %v1141
    %v1687 = vpack.c.b16 %v1147, %v1142
    %v1688 = vpack.c.b16 %v1148, %v1143
    %v1689 = vpack.c.b16 %v1149, %v1144
    %v1690 = vpack.c.b16 %v1155, %v1150
    %v1691 = vpack.c.b16 %v1156, %v1151
    %v1692 = vpack.c.b16 %v1157, %v1152
    %v1693 = vpack.c.b16 %v1158, %v1153
    %v1694 = vpack.c.b16 %v1159, %v1154
    %v1695 = vpack.c.b16 %v1165, %v1160
    %v1696 = vpack.c.b16 %v1166, %v1161
    %v1697 = vpack.c.b16 %v1167, %v1162
    %v1698 = vpack.c.b16 %v1168, %v1163
    %v1699 = vpack.c.b16 %v1169, %v1164
    %v1700 = vpack.c.b16 %v1175, %v1170
    %v1701 = vpack.c.b16 %v1176, %v1171
    %v1702 = vpack.c.b16 %v1177, %v1172
    %v1703 = vpack.c.b16 %v1178, %v1173
    %v1704 = vpack.c.b16 %v1179, %v1174
    %v1705 = vpack.c.b16 %v1185, %v1180
    %v1706 = vpack.c.b16 %v1186, %v1181
    %v1707 = vpack.c.b16 %v1187, %v1182
    %v1708 = vpack.c.b16 %v1188, %v1183
    %v1709 = vpack.c.b16 %v1189, %v1184
    %v1710 = vpack.c.b16 %v1195, %v1190
    %v1711 = vpack.c.b16 %v1196, %v1191
    %v1712 = vpack.c.b16 %v1197, %v1192
    %v1713 = vpack.c.b16 %v1198, %v1193
    %v1714 = vpack.c.b16 %v1199, %v1194
    %v1715 = vpack.c.b16 %v1205, %v1200
    %v1716 = vpack.c.b16 %v1206, %v1201
    %v1717 = vpack.c.b16 %v1207, %v1202
    %v1718 = vpack.c.b16 %v1208, %v1203
    %v1719 = vpack.c.b16 %v1209, %v1204
    %v1720 = vpack.c.b16 %v1215, %v1210
    %v1721 = vpack.c.b16 %v1216, %v1211
    %v1722 = vpack.c.b16 %v1217, %v1212
    %v1723 = vpack.c.b16 %v1218, %v1213
    %v1724 = vpack.c.b16 %v1219, %v1214
    %v1725 = vpack.c.b16 %v1225, %v1220
    %v1726 = vpack.c.b16 %v1226, %v1221
    %v1727 = vpack.c.b16 %v1227, %v1222
    %v1728 = vpack.c.b16 %v1228, %v1223
    %v1729 = vpack.c.b16 %v1229, %v1224
    %v1730 = vpack.c.b16 %v1235, %v1230
    %v1731 = vpack.c.b16 %v1236, %v1231
    %v1732 = vpack.c.b16 %v1237, %v1232
    %v1733 = vpack.c.b16 %v1238, %v1233
    %v1734 = vpack.c.b16 %v1239, %v1234
    %v1735 = vpack.c.b16 %v1245, %v1240
    %v1736 = vpack.c.b16 %v1246, %v1241
    %v1737 = vpack.c.b16 %v1247, %v1242
    %v1738 = vpack.c.b16 %v1248, %v1243
    %v1739 = vpack.c.b16 %v1249, %v1244
    %v1740 = vpack.c.b16 %v1255, %v1250
    %v1741 = vpack.c.b16 %v1256, %v1251
    %v1742 = vpack.c.b16 %v1257, %v1252
    %v1743 = vpack.c.b16 %v1258, %v1253
    %v1744 = vpack.c.b16 %v1259, %v1254
    %v1745 = vpack.c.b16 %v1265, %v1260
    %v1746 = vpack.c.b16 %v1266, %v1261
    %v1747 = vpack.c.b16 %v1267, %v1262
    %v1748 = vpack.c.b16 %v1268, %v1263
    %v1749 = vpack.c.b16 %v1269, %v1264
    %v1750 = vpack.c.b16 %v1275, %v1270
    %v1751 = vpack.c.b16 %v1276, %v1271
    %v1752 = vpack.c.b16 %v1277, %v1272
    %v1753 = vpack.c.b16 %v1278, %v1273
    %v1754 = vpack.c.b16 %v1279, %v1274
    %v1755 = vpack.c.b16 %v1285, %v1280
    %v1756 = vpack.c.b16 %v1286, %v1281
    %v1757 = vpack.c.b16 %v1287, %v1282
    %v1758 = vpack.c.b16 %v1288, %v1283
    %v1759 = vpack.c.b16 %v1289, %v1284
    %v1760 = vpack.c.b16 %v1295, %v1290
    %v1761 = vpack.c.b16 %v1296, %v1291
    %v1762 = vpack.c.b16 %v1297, %v1292
    %v1763 = vpack.c.b16 %v1298, %v1293
    %v1764 = vpack.c.b16 %v1299, %v1294
    %v1765 = vpack.c.b16 %v1305, %v1300
    %v1766 = vpack.c.b16 %v1306, %v1301
    %v1767 = vpack.c.b16 %v1307, %v1302
    %v1768 = vpack.c.b16 %v1308, %v1303
    %v1769 = vpack.c.b16 %v1309, %v1304
    %v1770 = vpack.c.b16 %v1315, %v1310
    %v1771 = vpack.c.b16 %v1316, %v1311
    %v1772 = vpack.c.b16 %v1317, %v1312
    %v1773 = vpack.c.b16 %v1318, %v1313
    %v1774 = vpack.c.b16 %v1319, %v1314
    %v1775 = vpack.c.b16 %v1325, %v1320
    %v1776 = vpack.c.b16 %v1326, %v1321
    %v1777 = vpack.c.b16 %v1327, %v1322
    %v1778 = vpack.c.b16 %v1328, %v1323
    %v1779 = vpack.c.b16 %v1329, %v1324
    %v1780 = vpack.c.b16 %v1335, %v1330
    %v1781 = vpack.c.b16 %v1336, %v1331
    %v1782 = vpack.c.b16 %v1337, %v1332
    %v1783 = vpack.c.b16 %v1338, %v1333
    %v1784 = vpack.c.b16 %v1339, %v1334
    %v1785 = vpack.c.b16 %v1345, %v1340
    %v1786 = vpack.c.b16 %v1346, %v1341
    %v1787 = vpack.c.b16 %v1347, %v1342
    %v1788 = vpack.c.b16 %v1348, %v1343
    %v1789 = vpack.c.b16 %v1349, %v1344
    %v1790 = vpack.c.b16 %v1355, %v1350
    %v1791 = vpack.c.b16 %v1356, %v1351
    %v1792 = vpack.c.b16 %v1357, %v1352
    %v1793 = vpack.c.b16 %v1358, %v1353
    %v1794 = vpack.c.b16 %v1359, %v1354
    %v1795 = vpack.c.b16 %v1365, %v1360
    %v1796 = vpack.c.b16 %v1366, %v1361
    %v1797 = vpack.c.b16 %v1367, %v1362
    %v1798 = vpack.c.b16 %v1368, %v1363
    %v1799 = vpack.c.b16 %v1369, %v1364
    %v1800 = vpack.c.b16 %v1375, %v1370
    %v1801 = vpack.c.b16 %v1376, %v1371
    %v1802 = vpack.c.b16 %v1377, %v1372
    %v1803 = vpack.c.b16 %v1378, %v1373
    %v1804 = vpack.c.b16 %v1379, %v1374
    %v1805 = vpack.c.b16 %v1385, %v1380
    %v1806 = vpack.c.b16 %v1386, %v1381
    %v1807 = vpack.c.b16 %v1387, %v1382
    %v1808 = vpack.c.b16 %v1388, %v1383
    %v1809 = vpack.c.b16 %v1389, %v1384
    %v1810 = vpack.c.b16 %v1395, %v1390
    %v1811 = vpack.c.b16 %v1396, %v1391
    %v1812 = vpack.c.b16 %v1397, %v1392
    %v1813 = vpack.c.b16 %v1398, %v1393
    %v1814 = vpack.c.b16 %v1399, %v1394
    %v1815 = vpack.c.b16 %v1405, %v1400
    %v1816 = vpack.c.b16 %v1406, %v1401
    %v1817 = vpack.c.b16 %v1407, %v1402
    %v1818 = vpack.c.b16 %v1408, %v1403
    %v1819 = vpack.c.b16 %v1409, %v1404
    %v1820 = vpack.c.b16 %v1415, %v1410
    %v1821 = vpack.c.b16 %v1416, %v1411
    %v1822 = vpack.c.b16 %v1417, %v1412
    %v1823 = vpack.c.b16 %v1418, %v1413
    %v1824 = vpack.c.b16 %v1419, %v1414
    %v1825 = vpack.c.b16 %v1425, %v1420
    %v1826 = vpack.c.b16 %v1426, %v1421
    %v1827 = vpack.c.b16 %v1427, %v1422
    %v1828 = vpack.c.b16 %v1428, %v1423
    %v1829 = vpack.c.b16 %v1429, %v1424
    %v1830 = vpack.c.b16 %v1435, %v1430
    %v1831 = vpack.c.b16 %v1436, %v1431
    %v1832 = vpack.c.b16 %v1437, %v1432
    %v1833 = vpack.c.b16 %v1438, %v1433
    %v1834 = vpack.c.b16 %v1439, %v1434
    %v1835 = vpack.c.b16 %v1445, %v1440
    %v1836 = vpack.c.b16 %v1446, %v1441
    %v1837 = vpack.c.b16 %v1447, %v1442
    %v1838 = vpack.c.b16 %v1448, %v1443
    %v1839 = vpack.c.b16 %v1449, %v1444
    %v1840 = vpack.c.b16 %v1455, %v1450
    %v1841 = vpack.c.b16 %v1456, %v1451
    %v1842 = vpack.c.b16 %v1457, %v1452
    %v1843 = vpack.c.b16 %v1458, %v1453
    %v1844 = vpack.c.b16 %v1459, %v1454
    %v1845 = vpack.c.b16 %v1465, %v1460
    %v1846 = vpack.c.b16 %v1466, %v1461
    %v1847 = vpack.c.b16 %v1467, %v1462
    %v1848 = vpack.c.b16 %v1468, %v1463
    %v1849 = vpack.c.b16 %v1469, %v1464
    %v1850 = vpack.c.b16 %v1475, %v1470
    %v1851 = vpack.c.b16 %v1476, %v1471
    %v1852 = vpack.c.b16 %v1477, %v1472
    %v1853 = vpack.c.b16 %v1478, %v1473
    %v1854 = vpack.c.b16 %v1479, %v1474
    %v1855 = vpack.c.b16 %v1485, %v1480
    %v1856 = vpack.c.b16 %v1486, %v1481
    %v1857 = vpack.c.b16 %v1487, %v1482
    %v1858 = vpack.c.b16 %v1488, %v1483
    %v1859 = vpack.c.b16 %v1489, %v1484
    %v1860 = vpack.c.b16 %v1495, %v1490
    %v1861 = vpack.c.b16 %v1496, %v1491
    %v1862 = vpack.c.b16 %v1497, %v1492
    %v1863 = vpack.c.b16 %v1498, %v1493
    %v1864 = vpack.c.b16 %v1499, %v1494
    %v1865 = vpack.c.b16 %v1505, %v1500
    %v1866 = vpack.c.b16 %v1506, %v1501
    %v1867 = vpack.c.b16 %v1507, %v1502
    %v1868 = vpack.c.b16 %v1508, %v1503
    %v1869 = vpack.c.b16 %v1509, %v1504
    %v1870 = vpack.c.b16 %v1515, %v1510
    %v1871 = vpack.c.b16 %v1516, %v1511
    %v1872 = vpack.c.b16 %v1517, %v1512
    %v1873 = vpack.c.b16 %v1518, %v1513
    %v1874 = vpack.c.b16 %v1519, %v1514
    %v1875 = vpack.c.b16 %v1525, %v1520
    %v1876 = vpack.c.b16 %v1526, %v1521
    %v1877 = vpack.c.b16 %v1527, %v1522
    %v1878 = vpack.c.b16 %v1528, %v1523
    %v1879 = vpack.c.b16 %v1529, %v1524
    %v1880 = vpack.c.b16 %v1535, %v1530
    %v1881 = vpack.c.b16 %v1536, %v1531
    %v1882 = vpack.c.b16 %v1537, %v1532
    %v1883 = vpack.c.b16 %v1538, %v1533
    %v1884 = vpack.c.b16 %v1539, %v1534
    %v1885 = vpack.c.b16 %v1545, %v1540
    %v1886 = vpack.c.b16 %v1546, %v1541
    %v1887 = vpack.c.b16 %v1547, %v1542
    %v1888 = vpack.c.b16 %v1548, %v1543
    %v1889 = vpack.c.b16 %v1549, %v1544
    %v1890 = vpack.c.b16 %v1555, %v1550
    %v1891 = vpack.c.b16 %v1556, %v1551
    %v1892 = vpack.c.b16 %v1557, %v1552
    %v1893 = vpack.c.b16 %v1558, %v1553
    %v1894 = vpack.c.b16 %v1559, %v1554
    %v1895 = vpack.c.b16 %v1565, %v1560
    %v1896 = vpack.c.b16 %v1566, %v1561
    %v1897 = vpack.c.b16 %v1567, %v1562
    %v1898 = vpack.c.b16 %v1568, %v1563
    %v1899 = vpack.c.b16 %v1569, %v1564
    %v1900 = vpack.c.b16 %v1575, %v1570
    %v1901 = vpack.c.b16 %v1576, %v1571
    %v1902 = vpack.c.b16 %v1577, %v1572
    %v1903 = vpack.c.b16 %v1578, %v1573
    %v1904 = vpack.c.b16 %v1579, %v1574
    %v1905 = vpack.c.b16 %v1585, %v1580
    %v1906 = vpack.c.b16 %v1586, %v1581
    %v1907 = vpack.c.b16 %v1587, %v1582
    %v1908 = vpack.c.b16 %v1588, %v1583
    %v1909 = vpack.c.b16 %v1589, %v1584
    %v1910 = vpack.c.b16 %v1595, %v1590
    %v1911 = vpack.c.b16 %v1596, %v1591
    %v1912 = vpack.c.b16 %v1597, %v1592
    %v1913 = vpack.c.b16 %v1598, %v1593
    %v1914 = vpack.c.b16 %v1599, %v1594
    %v1915 = vpack.c.b16 %v1605, %v1600
    %v1916 = vpack.c.b16 %v1606, %v1601
    %v1917 = vpack.c.b16 %v1607, %v1602
    %v1918 = vpack.c.b16 %v1608, %v1603
    %v1919 = vpack.c.b16 %v1609, %v1604
    %v1920 = vpack.c.b16 %v1615, %v1610
    %v1921 = vpack.c.b16 %v1616, %v1611
    %v1922 = vpack.c.b16 %v1617, %v1612
    %v1923 = vpack.c.b16 %v1618, %v1613
    %v1924 = vpack.c.b16 %v1619, %v1614
    %v1925 = vpack.c.b16 %v1625, %v1620
    %v1926 = vpack.c.b16 %v1626, %v1621
    %v1927 = vpack.c.b16 %v1627, %v1622
    %v1928 = vpack.c.b16 %v1628, %v1623
    %v1929 = vpack.c.b16 %v1629, %v1624
    %v1930 = vpack.c.b16 %v1635, %v1630
    %v1931 = vpack.c.b16 %v1636, %v1631
    %v1932 = vpack.c.b16 %v1637, %v1632
    %v1933 = vpack.c.b16 %v1638, %v1633
    %v1934 = vpack.c.b16 %v1639, %v1634
    %v1935 = vpack.c.b16 %v1645, %v1640
    %v1936 = vpack.c.b16 %v1646, %v1641
    %v1937 = vpack.c.b16 %v1647, %v1642
    %v1938 = vpack.c.b16 %v1648, %v1643
    %v1939 = vpack.c.b16 %v1649, %v1644
    %v1940 = vpack.c.b16 %v1655, %v1650
    %v1941 = vpack.c.b16 %v1656, %v1651
    %v1942 = vpack.c.b16 %v1657, %v1652
    %v1943 = vpack.c.b16 %v1658, %v1653
    %v1944 = vpack.c.b16 %v1659, %v1654
    %v1945 = vpack.c.b16 %v1665, %v1660
    %v1946 = vpack.c.b16 %v1666, %v1661
    %v1947 = vpack.c.b16 %v1667, %v1662
    %v1948 = vpack.c.b16 %v1668, %v1663
    %v1949 = vpack.c.b16 %v1669, %v1664
    %2230 = vmatprep.subr.bf16.mxu0 %v1671
    %2231 = vmatpush1.bf16.msra.mxu0 %v1670
    %2232 = vmatprep.subr.bf16.mxu0 %v1676
    %2233 = vmatpush1.bf16.msra.mxu0 %v1675
    %2234 = vmatprep.subr.bf16.mxu0 %v1681
    %2235 = vmatpush1.bf16.msra.mxu0 %v1680
    %2236 = vmatprep.subr.bf16.mxu0 %v1686
    %2237 = vmatpush1.bf16.msra.mxu0 %v1685
    %2238 = vmatprep.subr.bf16.mxu0 %v1691
    %2239 = vmatpush1.bf16.msra.mxu0 %v1690
    %2240 = vmatprep.subr.bf16.mxu0 %v1696
    %2241 = vmatpush1.bf16.msra.mxu0 %v1695
    %2242 = vmatprep.subr.bf16.mxu0 %v1701
    %2243 = vmatpush1.bf16.msra.mxu0 %v1700
    %2244 = vmatprep.subr.bf16.mxu0 %v1706
    %2245 = vmatpush1.bf16.msra.mxu0 %v1705
    %2246 = vmatprep.subr.bf16.mxu0 %v1711
    %2247 = vmatpush1.bf16.msra.mxu0 %v1710
    %2248 = vmatprep.subr.bf16.mxu0 %v1716
    %2249 = vmatpush1.bf16.msra.mxu0 %v1715
    %2250 = vmatprep.subr.bf16.mxu0 %v1721
    %2251 = vmatpush1.bf16.msra.mxu0 %v1720
    %2252 = vmatprep.subr.bf16.mxu0 %v1726
    %2253 = vmatpush1.bf16.msra.mxu0 %v1725
    %2254 = vmatprep.subr.bf16.mxu0 %v1731
    %2255 = vmatpush1.bf16.msra.mxu0 %v1730
    %2256 = vmatprep.subr.bf16.mxu0 %v1736
    %2257 = vmatpush1.bf16.msra.mxu0 %v1735
    %2258 = vmatprep.subr.bf16.mxu0 %v1741
    %2259 = vmatpush1.bf16.msra.mxu0 %v1740
    %2260 = vmatprep.subr.bf16.mxu0 %v1746
    %2261 = vmatpush1.bf16.msra.mxu0 %v1745
    %2262 = vmatprep.mubr.bf16.mxu0 %v405
    %2263 = vmatmul.mubr.bf16.gmra.mrb[0].mxu0 %v404
    %v2264 = vpop.f32.mrb[0].mxu0
    %v2265 = vadd.f32 %v752, %v2264
    %v2266 = vpop.f32.mrb[0].mxu0
    %v2267 = vadd.f32 %v756, %v2266
    %v2268 = vpop.f32.mrb[0].mxu0
    %v2269 = vpop.f32.mrb[0].mxu0
    %2270 = vdwg.mxu0
    %2271 = vmatprep.subr.bf16.mxu0 %v1751
    %2272 = vmatpush1.bf16.msra.mxu0 %v1750
    %2273 = vmatprep.subr.bf16.mxu0 %v1756
    %2274 = vmatpush1.bf16.msra.mxu0 %v1755
    %2275 = vmatprep.subr.bf16.mxu0 %v1761
    %2276 = vmatpush1.bf16.msra.mxu0 %v1760
    %2277 = vmatprep.subr.bf16.mxu0 %v1766
    %2278 = vmatpush1.bf16.msra.mxu0 %v1765
    %2279 = vmatprep.subr.bf16.mxu0 %v1771
    %2280 = vmatpush1.bf16.msra.mxu0 %v1770
    %2281 = vmatprep.subr.bf16.mxu0 %v1776
    %2282 = vmatpush1.bf16.msra.mxu0 %v1775
    %2283 = vmatprep.subr.bf16.mxu0 %v1781
    %2284 = vmatpush1.bf16.msra.mxu0 %v1780
    %2285 = vmatprep.subr.bf16.mxu0 %v1786
    %2286 = vmatpush1.bf16.msra.mxu0 %v1785
    %2287 = vmatprep.subr.bf16.mxu0 %v1791
    %2288 = vmatpush1.bf16.msra.mxu0 %v1790
    %2289 = vmatprep.subr.bf16.mxu0 %v1796
    %2290 = vmatpush1.bf16.msra.mxu0 %v1795
    %2291 = vmatprep.subr.bf16.mxu0 %v1801
    %2292 = vmatpush1.bf16.msra.mxu0 %v1800
    %2293 = vmatprep.subr.bf16.mxu0 %v1806
    %2294 = vmatpush1.bf16.msra.mxu0 %v1805
    %2295 = vmatprep.subr.bf16.mxu0 %v1811
    %2296 = vmatpush1.bf16.msra.mxu0 %v1810
    %2297 = vmatprep.subr.bf16.mxu0 %v1816
    %2298 = vmatpush1.bf16.msra.mxu0 %v1815
    %2299 = vmatprep.subr.bf16.mxu0 %v1821
    %2300 = vmatpush1.bf16.msra.mxu0 %v1820
    %2301 = vmatprep.subr.bf16.mxu0 %v1826
    %2302 = vmatpush1.bf16.msra.mxu0 %v1825
    %2303 = vmatprep.mubr.bf16.mxu0 %v407
    %2304 = vmatmul.mubr.bf16.gmra.mrb[0].mxu0 %v406
    %v2305 = vpop.f32.mrb[0].mxu0
    %v2306 = vadd.f32 %v2265, %v2305
    %v2307 = vpop.f32.mrb[0].mxu0
    %v2308 = vadd.f32 %v2267, %v2307
    %v2309 = vpop.f32.mrb[0].mxu0
    %v2310 = vpop.f32.mrb[0].mxu0
    %2311 = vdwg.mxu0
    %2312 = vmatprep.subr.bf16.mxu0 %v1831
    %2313 = vmatpush1.bf16.msra.mxu0 %v1830
    %2314 = vmatprep.subr.bf16.mxu0 %v1836
    %2315 = vmatpush1.bf16.msra.mxu0 %v1835
    %2316 = vmatprep.subr.bf16.mxu0 %v1841
    %2317 = vmatpush1.bf16.msra.mxu0 %v1840
    %2318 = vmatprep.subr.bf16.mxu0 %v1846
    %2319 = vmatpush1.bf16.msra.mxu0 %v1845
    %2320 = vmatprep.subr.bf16.mxu0 %v1851
    %2321 = vmatpush1.bf16.msra.mxu0 %v1850
    %2322 = vmatprep.subr.bf16.mxu0 %v1856
    %2323 = vmatpush1.bf16.msra.mxu0 %v1855
    %2324 = vmatprep.subr.bf16.mxu0 %v1861
    %2325 = vmatpush1.bf16.msra.mxu0 %v1860
    %2326 = vmatprep.subr.bf16.mxu0 %v1866
    %2327 = vmatpush1.bf16.msra.mxu0 %v1865
    %2328 = vmatprep.subr.bf16.mxu0 %v1871
    %2329 = vmatpush1.bf16.msra.mxu0 %v1870
    %2330 = vmatprep.subr.bf16.mxu0 %v1876
    %2331 = vmatpush1.bf16.msra.mxu0 %v1875
    %2332 = vmatprep.subr.bf16.mxu0 %v1881
    %2333 = vmatpush1.bf16.msra.mxu0 %v1880
    %2334 = vmatprep.subr.bf16.mxu0 %v1886
    %2335 = vmatpush1.bf16.msra.mxu0 %v1885
    %2336 = vmatprep.subr.bf16.mxu0 %v1891
    %2337 = vmatpush1.bf16.msra.mxu0 %v1890
    %2338 = vmatprep.subr.bf16.mxu0 %v1896
    %2339 = vmatpush1.bf16.msra.mxu0 %v1895
    %2340 = vmatprep.subr.bf16.mxu0 %v1901
    %2341 = vmatpush1.bf16.msra.mxu0 %v1900
    %2342 = vmatprep.subr.bf16.mxu0 %v1906
    %2343 = vmatpush1.bf16.msra.mxu0 %v1905
    %2344 = vmatprep.mubr.bf16.mxu0 %v409
    %2345 = vmatmul.mubr.bf16.gmra.mrb[0].mxu0 %v408
    %v2346 = vpop.f32.mrb[0].mxu0
    %v2347 = vadd.f32 %v2306, %v2346
    %v2348 = vpop.f32.mrb[0].mxu0
    %v2349 = vadd.f32 %v2308, %v2348
    %v2350 = vpop.f32.mrb[0].mxu0
    %v2351 = vpop.f32.mrb[0].mxu0
    %2352 = vdwg.mxu0
    %2353 = vmatprep.subr.bf16.mxu0 %v1911
    %2354 = vmatpush1.bf16.msra.mxu0 %v1910
    %2355 = vmatprep.subr.bf16.mxu0 %v1916
    %2356 = vmatpush1.bf16.msra.mxu0 %v1915
    %2357 = vmatprep.subr.bf16.mxu0 %v1921
    %2358 = vmatpush1.bf16.msra.mxu0 %v1920
    %2359 = vmatprep.subr.bf16.mxu0 %v1926
    %2360 = vmatpush1.bf16.msra.mxu0 %v1925
    %2361 = vmatprep.subr.bf16.mxu0 %v1931
    %2362 = vmatpush1.bf16.msra.mxu0 %v1930
    %2363 = vmatprep.subr.bf16.mxu0 %v1936
    %2364 = vmatpush1.bf16.msra.mxu0 %v1935
    %2365 = vmatprep.subr.bf16.mxu0 %v1941
    %2366 = vmatpush1.bf16.msra.mxu0 %v1940
    %2367 = vmatprep.subr.bf16.mxu0 %v1946
    %2368 = vmatpush1.bf16.msra.mxu0 %v1945
    %2369 = vmatprep.subr.bf16.mxu0 0
    %2370 = vmatpush1.bf16.msra.mxu0 0
    %2371 = vmatprep.subr.bf16.mxu0 0
    %2372 = vmatpush1.bf16.msra.mxu0 0
    %2373 = vmatprep.subr.bf16.mxu0 0
    %2374 = vmatpush1.bf16.msra.mxu0 0
    %2375 = vmatprep.subr.bf16.mxu0 0
    %2376 = vmatpush1.bf16.msra.mxu0 0
    %2377 = vmatprep.subr.bf16.mxu0 0
    %2378 = vmatpush1.bf16.msra.mxu0 0
    %2379 = vmatprep.subr.bf16.mxu0 0
    %2380 = vmatpush1.bf16.msra.mxu0 0
    %2381 = vmatprep.subr.bf16.mxu0 0
    %2382 = vmatpush1.bf16.msra.mxu0 0
    %2383 = vmatprep.subr.bf16.mxu0 0
    %2384 = vmatpush1.bf16.msra.mxu0 0
    %2385 = vmatprep.mubr.bf16.mxu0 0
    %2386 = vmatmul.mubr.bf16.gmra.mrb[0].mxu0 %v410
    %v2387 = vpop.f32.mrb[0].mxu0
    %v2388 = vadd.f32 %v2347, %v2387
    %v2389 = vpop.f32.mrb[0].mxu0
    %v2390 = vadd.f32 %v2349, %v2389
    %v2391 = vpop.f32.mrb[0].mxu0
    %v2392 = vpop.f32.mrb[0].mxu0
    %2393 = vdwg.mxu0
    %2394 = vmatprep.subr.bf16.mxu0 %v1673
    %2395 = vmatpush1.bf16.msra.mxu0 %v1672
    %2396 = vmatprep.subr.bf16.mxu0 %v1678
    %2397 = vmatpush1.bf16.msra.mxu0 %v1677
    %2398 = vmatprep.subr.bf16.mxu0 %v1683
    %2399 = vmatpush1.bf16.msra.mxu0 %v1682
    %2400 = vmatprep.subr.bf16.mxu0 %v1688
    %2401 = vmatpush1.bf16.msra.mxu0 %v1687
    %2402 = vmatprep.subr.bf16.mxu0 %v1693
    %2403 = vmatpush1.bf16.msra.mxu0 %v1692
    %2404 = vmatprep.subr.bf16.mxu0 %v1698
    %2405 = vmatpush1.bf16.msra.mxu0 %v1697
    %2406 = vmatprep.subr.bf16.mxu0 %v1703
    %2407 = vmatpush1.bf16.msra.mxu0 %v1702
    %2408 = vmatprep.subr.bf16.mxu0 %v1708
    %2409 = vmatpush1.bf16.msra.mxu0 %v1707
    %2410 = vmatprep.subr.bf16.mxu0 %v1713
    %2411 = vmatpush1.bf16.msra.mxu0 %v1712
    %2412 = vmatprep.subr.bf16.mxu0 %v1718
    %2413 = vmatpush1.bf16.msra.mxu0 %v1717
    %2414 = vmatprep.subr.bf16.mxu0 %v1723
    %2415 = vmatpush1.bf16.msra.mxu0 %v1722
    %2416 = vmatprep.subr.bf16.mxu0 %v1728
    %2417 = vmatpush1.bf16.msra.mxu0 %v1727
    %2418 = vmatprep.subr.bf16.mxu0 %v1733
    %2419 = vmatpush1.bf16.msra.mxu0 %v1732
    %2420 = vmatprep.subr.bf16.mxu0 %v1738
    %2421 = vmatpush1.bf16.msra.mxu0 %v1737
    %2422 = vmatprep.subr.bf16.mxu0 %v1743
    %2423 = vmatpush1.bf16.msra.mxu0 %v1742
    %2424 = vmatprep.subr.bf16.mxu0 %v1748
    %2425 = vmatpush1.bf16.msra.mxu0 %v1747
    %2426 = vmatprep.mubr.bf16.mxu0 %v405
    %2427 = vmatmul.mubr.bf16.gmra.mrb[0].mxu0 %v404
    %v2428 = vpop.f32.mrb[0].mxu0
    %v2429 = vadd.f32 %v760, %v2428
    %v2430 = vpop.f32.mrb[0].mxu0
    %v2431 = vadd.f32 %v764, %v2430
    %v2432 = vpop.f32.mrb[0].mxu0
    %v2433 = vpop.f32.mrb[0].mxu0
    %2434 = vdwg.mxu0
    %2435 = vmatprep.subr.bf16.mxu0 %v1753
    %2436 = vmatpush1.bf16.msra.mxu0 %v1752
    %2437 = vmatprep.subr.bf16.mxu0 %v1758
    %2438 = vmatpush1.bf16.msra.mxu0 %v1757
    %2439 = vmatprep.subr.bf16.mxu0 %v1763
    %2440 = vmatpush1.bf16.msra.mxu0 %v1762
    %2441 = vmatprep.subr.bf16.mxu0 %v1768
    %2442 = vmatpush1.bf16.msra.mxu0 %v1767
    %2443 = vmatprep.subr.bf16.mxu0 %v1773
    %2444 = vmatpush1.bf16.msra.mxu0 %v1772
    %2445 = vmatprep.subr.bf16.mxu0 %v1778
    %2446 = vmatpush1.bf16.msra.mxu0 %v1777
    %2447 = vmatprep.subr.bf16.mxu0 %v1783
    %2448 = vmatpush1.bf16.msra.mxu0 %v1782
    %2449 = vmatprep.subr.bf16.mxu0 %v1788
    %2450 = vmatpush1.bf16.msra.mxu0 %v1787
    %2451 = vmatprep.subr.bf16.mxu0 %v1793
    %2452 = vmatpush1.bf16.msra.mxu0 %v1792
    %2453 = vmatprep.subr.bf16.mxu0 %v1798
    %2454 = vmatpush1.bf16.msra.mxu0 %v1797
    %2455 = vmatprep.subr.bf16.mxu0 %v1803
    %2456 = vmatpush1.bf16.msra.mxu0 %v1802
    %2457 = vmatprep.subr.bf16.mxu0 %v1808
    %2458 = vmatpush1.bf16.msra.mxu0 %v1807
    %2459 = vmatprep.subr.bf16.mxu0 %v1813
    %2460 = vmatpush1.bf16.msra.mxu0 %v1812
    %2461 = vmatprep.subr.bf16.mxu0 %v1818
    %2462 = vmatpush1.bf16.msra.mxu0 %v1817
    %2463 = vmatprep.subr.bf16.mxu0 %v1823
    %2464 = vmatpush1.bf16.msra.mxu0 %v1822
    %2465 = vmatprep.subr.bf16.mxu0 %v1828
    %2466 = vmatpush1.bf16.msra.mxu0 %v1827
    %2467 = vmatprep.mubr.bf16.mxu0 %v407
    %2468 = vmatmul.mubr.bf16.gmra.mrb[0].mxu0 %v406
    %v2469 = vpop.f32.mrb[0].mxu0
    %v2470 = vadd.f32 %v2429, %v2469
    %v2471 = vpop.f32.mrb[0].mxu0
    %v2472 = vadd.f32 %v2431, %v2471
    %v2473 = vpop.f32.mrb[0].mxu0
    %v2474 = vpop.f32.mrb[0].mxu0
    %2475 = vdwg.mxu0
    %2476 = vmatprep.subr.bf16.mxu0 %v1833
    %2477 = vmatpush1.bf16.msra.mxu0 %v1832
    %2478 = vmatprep.subr.bf16.mxu0 %v1838
    %2479 = vmatpush1.bf16.msra.mxu0 %v1837
    %2480 = vmatprep.subr.bf16.mxu0 %v1843
    %2481 = vmatpush1.bf16.msra.mxu0 %v1842
    %2482 = vmatprep.subr.bf16.mxu0 %v1848
    %2483 = vmatpush1.bf16.msra.mxu0 %v1847
    %2484 = vmatprep.subr.bf16.mxu0 %v1853
    %2485 = vmatpush1.bf16.msra.mxu0 %v1852
    %2486 = vmatprep.subr.bf16.mxu0 %v1858
    %2487 = vmatpush1.bf16.msra.mxu0 %v1857
    %2488 = vmatprep.subr.bf16.mxu0 %v1863
    %2489 = vmatpush1.bf16.msra.mxu0 %v1862
    %2490 = vmatprep.subr.bf16.mxu0 %v1868
    %2491 = vmatpush1.bf16.msra.mxu0 %v1867
    %2492 = vmatprep.subr.bf16.mxu0 %v1873
    %2493 = vmatpush1.bf16.msra.mxu0 %v1872
    %2494 = vmatprep.subr.bf16.mxu0 %v1878
    %2495 = vmatpush1.bf16.msra.mxu0 %v1877
    %2496 = vmatprep.subr.bf16.mxu0 %v1883
    %2497 = vmatpush1.bf16.msra.mxu0 %v1882
    %2498 = vmatprep.subr.bf16.mxu0 %v1888
    %2499 = vmatpush1.bf16.msra.mxu0 %v1887
    %2500 = vmatprep.subr.bf16.mxu0 %v1893
    %2501 = vmatpush1.bf16.msra.mxu0 %v1892
    %2502 = vmatprep.subr.bf16.mxu0 %v1898
    %2503 = vmatpush1.bf16.msra.mxu0 %v1897
    %2504 = vmatprep.subr.bf16.mxu0 %v1903
    %2505 = vmatpush1.bf16.msra.mxu0 %v1902
    %2506 = vmatprep.subr.bf16.mxu0 %v1908
    %2507 = vmatpush1.bf16.msra.mxu0 %v1907
    %2508 = vmatprep.mubr.bf16.mxu0 %v409
    %2509 = vmatmul.mubr.bf16.gmra.mrb[0].mxu0 %v408
    %v2510 = vpop.f32.mrb[0].mxu0
    %v2511 = vadd.f32 %v2470, %v2510
    %v2512 = vpop.f32.mrb[0].mxu0
    %v2513 = vadd.f32 %v2472, %v2512
    %v2514 = vpop.f32.mrb[0].mxu0
    %v2515 = vpop.f32.mrb[0].mxu0
    %2516 = vdwg.mxu0
    %2517 = vmatprep.subr.bf16.mxu0 %v1913
    %2518 = vmatpush1.bf16.msra.mxu0 %v1912
    %2519 = vmatprep.subr.bf16.mxu0 %v1918
    %2520 = vmatpush1.bf16.msra.mxu0 %v1917
    %2521 = vmatprep.subr.bf16.mxu0 %v1923
    %2522 = vmatpush1.bf16.msra.mxu0 %v1922
    %2523 = vmatprep.subr.bf16.mxu0 %v1928
    %2524 = vmatpush1.bf16.msra.mxu0 %v1927
    %2525 = vmatprep.subr.bf16.mxu0 %v1933
    %2526 = vmatpush1.bf16.msra.mxu0 %v1932
    %2527 = vmatprep.subr.bf16.mxu0 %v1938
    %2528 = vmatpush1.bf16.msra.mxu0 %v1937
    %2529 = vmatprep.subr.bf16.mxu0 %v1943
    %2530 = vmatpush1.bf16.msra.mxu0 %v1942
    %2531 = vmatprep.subr.bf16.mxu0 %v1948
    %2532 = vmatpush1.bf16.msra.mxu0 %v1947
    %2533 = vmatprep.subr.bf16.mxu0 0
    %2534 = vmatpush1.bf16.msra.mxu0 0
    %2535 = vmatprep.subr.bf16.mxu0 0
    %2536 = vmatpush1.bf16.msra.mxu0 0
    %2537 = vmatprep.subr.bf16.mxu0 0
    %2538 = vmatpush1.bf16.msra.mxu0 0
    %2539 = vmatprep.subr.bf16.mxu0 0
    %2540 = vmatpush1.bf16.msra.mxu0 0
    %2541 = vmatprep.subr.bf16.mxu0 0
    %2542 = vmatpush1.bf16.msra.mxu0 0
    %2543 = vmatprep.subr.bf16.mxu0 0
    %2544 = vmatpush1.bf16.msra.mxu0 0
    %2545 = vmatprep.subr.bf16.mxu0 0
    %2546 = vmatpush1.bf16.msra.mxu0 0
    %2547 = vmatprep.subr.bf16.mxu0 0
    %2548 = vmatpush1.bf16.msra.mxu0 0
    %2549 = vmatprep.mubr.bf16.mxu0 0
    %2550 = vmatmul.mubr.bf16.gmra.mrb[0].mxu0 %v410
    %v2551 = vpop.f32.mrb[0].mxu0
    %v2552 = vadd.f32 %v2511, %v2551
    %v2553 = vpop.f32.mrb[0].mxu0
    %v2554 = vadd.f32 %v2513, %v2553
    %v2555 = vpop.f32.mrb[0].mxu0
    %v2556 = vpop.f32.mrb[0].mxu0
    %2557 = vdwg.mxu0
    %2558 = vmatprep.subr.bf16.mxu0 0
    %2559 = vmatpush1.bf16.msra.mxu0 %v1674
    %2560 = vmatprep.subr.bf16.mxu0 0
    %2561 = vmatpush1.bf16.msra.mxu0 %v1679
    %2562 = vmatprep.subr.bf16.mxu0 0
    %2563 = vmatpush1.bf16.msra.mxu0 %v1684
    %2564 = vmatprep.subr.bf16.mxu0 0
    %2565 = vmatpush1.bf16.msra.mxu0 %v1689
    %2566 = vmatprep.subr.bf16.mxu0 0
    %2567 = vmatpush1.bf16.msra.mxu0 %v1694
    %2568 = vmatprep.subr.bf16.mxu0 0
    %2569 = vmatpush1.bf16.msra.mxu0 %v1699
    %2570 = vmatprep.subr.bf16.mxu0 0
    %2571 = vmatpush1.bf16.msra.mxu0 %v1704
    %2572 = vmatprep.subr.bf16.mxu0 0
    %2573 = vmatpush1.bf16.msra.mxu0 %v1709
    %2574 = vmatprep.subr.bf16.mxu0 0
    %2575 = vmatpush1.bf16.msra.mxu0 %v1714
    %2576 = vmatprep.subr.bf16.mxu0 0
    %2577 = vmatpush1.bf16.msra.mxu0 %v1719
    %2578 = vmatprep.subr.bf16.mxu0 0
    %2579 = vmatpush1.bf16.msra.mxu0 %v1724
    %2580 = vmatprep.subr.bf16.mxu0 0
    %2581 = vmatpush1.bf16.msra.mxu0 %v1729
    %2582 = vmatprep.subr.bf16.mxu0 0
    %2583 = vmatpush1.bf16.msra.mxu0 %v1734
    %2584 = vmatprep.subr.bf16.mxu0 0
    %2585 = vmatpush1.bf16.msra.mxu0 %v1739
    %2586 = vmatprep.subr.bf16.mxu0 0
    %2587 = vmatpush1.bf16.msra.mxu0 %v1744
    %2588 = vmatprep.subr.bf16.mxu0 0
    %2589 = vmatpush1.bf16.msra.mxu0 %v1749
    %2590 = vmatprep.mubr.bf16.mxu0 %v405
    %2591 = vmatmul.mubr.bf16.gmra.mrb[0].mxu0 %v404
    %v2592 = vpop.f32.mrb[0].mxu0
    %v2593 = vadd.f32 %v768, %v2592
    %v2594 = vpop.f32.mrb[0].mxu0
    %v2595 = vpop.f32.mrb[0].mxu0
    %v2596 = vpop.f32.mrb[0].mxu0
    %2597 = vdwg.mxu0
    %2598 = vmatprep.subr.bf16.mxu0 0
    %2599 = vmatpush1.bf16.msra.mxu0 %v1754
    %2600 = vmatprep.subr.bf16.mxu0 0
    %2601 = vmatpush1.bf16.msra.mxu0 %v1759
    %2602 = vmatprep.subr.bf16.mxu0 0
    %2603 = vmatpush1.bf16.msra.mxu0 %v1764
    %2604 = vmatprep.subr.bf16.mxu0 0
    %2605 = vmatpush1.bf16.msra.mxu0 %v1769
    %2606 = vmatprep.subr.bf16.mxu0 0
    %2607 = vmatpush1.bf16.msra.mxu0 %v1774
    %2608 = vmatprep.subr.bf16.mxu0 0
    %2609 = vmatpush1.bf16.msra.mxu0 %v1779
    %2610 = vmatprep.subr.bf16.mxu0 0
    %2611 = vmatpush1.bf16.msra.mxu0 %v1784
    %2612 = vmatprep.subr.bf16.mxu0 0
    %2613 = vmatpush1.bf16.msra.mxu0 %v1789
    %2614 = vmatprep.subr.bf16.mxu0 0
    %2615 = vmatpush1.bf16.msra.mxu0 %v1794
    %2616 = vmatprep.subr.bf16.mxu0 0
    %2617 = vmatpush1.bf16.msra.mxu0 %v1799
    %2618 = vmatprep.subr.bf16.mxu0 0
    %2619 = vmatpush1.bf16.msra.mxu0 %v1804
    %2620 = vmatprep.subr.bf16.mxu0 0
    %2621 = vmatpush1.bf16.msra.mxu0 %v1809
    %2622 = vmatprep.subr.bf16.mxu0 0
    %2623 = vmatpush1.bf16.msra.mxu0 %v1814
    %2624 = vmatprep.subr.bf16.mxu0 0
    %2625 = vmatpush1.bf16.msra.mxu0 %v1819
    %2626 = vmatprep.subr.bf16.mxu0 0
    %2627 = vmatpush1.bf16.msra.mxu0 %v1824
    %2628 = vmatprep.subr.bf16.mxu0 0
    %2629 = vmatpush1.bf16.msra.mxu0 %v1829
    %2630 = vmatprep.mubr.bf16.mxu0 %v407
    %2631 = vmatmul.mubr.bf16.gmra.mrb[0].mxu0 %v406
    %v2632 = vpop.f32.mrb[0].mxu0
    %v2633 = vadd.f32 %v2593, %v2632
    %v2634 = vpop.f32.mrb[0].mxu0
    %v2635 = vpop.f32.mrb[0].mxu0
    %v2636 = vpop.f32.mrb[0].mxu0
    %2637 = vdwg.mxu0
    %2638 = vmatprep.subr.bf16.mxu0 0
    %2639 = vmatpush1.bf16.msra.mxu0 %v1834
    %2640 = vmatprep.subr.bf16.mxu0 0
    %2641 = vmatpush1.bf16.msra.mxu0 %v1839
    %2642 = vmatprep.subr.bf16.mxu0 0
    %2643 = vmatpush1.bf16.msra.mxu0 %v1844
    %2644 = vmatprep.subr.bf16.mxu0 0
    %2645 = vmatpush1.bf16.msra.mxu0 %v1849
    %2646 = vmatprep.subr.bf16.mxu0 0
    %2647 = vmatpush1.bf16.msra.mxu0 %v1854
    %2648 = vmatprep.subr.bf16.mxu0 0
    %2649 = vmatpush1.bf16.msra.mxu0 %v1859
    %2650 = vmatprep.subr.bf16.mxu0 0
    %2651 = vmatpush1.bf16.msra.mxu0 %v1864
    %2652 = vmatprep.subr.bf16.mxu0 0
    %2653 = vmatpush1.bf16.msra.mxu0 %v1869
    %2654 = vmatprep.subr.bf16.mxu0 0
    %2655 = vmatpush1.bf16.msra.mxu0 %v1874
    %2656 = vmatprep.subr.bf16.mxu0 0
    %2657 = vmatpush1.bf16.msra.mxu0 %v1879
    %2658 = vmatprep.subr.bf16.mxu0 0
    %2659 = vmatpush1.bf16.msra.mxu0 %v1884
    %2660 = vmatprep.subr.bf16.mxu0 0
    %2661 = vmatpush1.bf16.msra.mxu0 %v1889
    %2662 = vmatprep.subr.bf16.mxu0 0
    %2663 = vmatpush1.bf16.msra.mxu0 %v1894
    %2664 = vmatprep.subr.bf16.mxu0 0
    %2665 = vmatpush1.bf16.msra.mxu0 %v1899
    %2666 = vmatprep.subr.bf16.mxu0 0
    %2667 = vmatpush1.bf16.msra.mxu0 %v1904
    %2668 = vmatprep.subr.bf16.mxu0 0
    %2669 = vmatpush1.bf16.msra.mxu0 %v1909
    %2670 = vmatprep.mubr.bf16.mxu0 %v409
    %2671 = vmatmul.mubr.bf16.gmra.mrb[0].mxu0 %v408
    %v2672 = vpop.f32.mrb[0].mxu0
    %v2673 = vadd.f32 %v2633, %v2672
    %v2674 = vpop.f32.mrb[0].mxu0
    %v2675 = vpop.f32.mrb[0].mxu0
    %v2676 = vpop.f32.mrb[0].mxu0
    %2677 = vdwg.mxu0
    %2678 = vmatprep.subr.bf16.mxu0 0
    %2679 = vmatpush1.bf16.msra.mxu0 %v1914
    %2680 = vmatprep.subr.bf16.mxu0 0
    %2681 = vmatpush1.bf16.msra.mxu0 %v1919
    %2682 = vmatprep.subr.bf16.mxu0 0
    %2683 = vmatpush1.bf16.msra.mxu0 %v1924
    %2684 = vmatprep.subr.bf16.mxu0 0
    %2685 = vmatpush1.bf16.msra.mxu0 %v1929
    %2686 = vmatprep.subr.bf16.mxu0 0
    %2687 = vmatpush1.bf16.msra.mxu0 %v1934
    %2688 = vmatprep.subr.bf16.mxu0 0
    %2689 = vmatpush1.bf16.msra.mxu0 %v1939
    %2690 = vmatprep.subr.bf16.mxu0 0
    %2691 = vmatpush1.bf16.msra.mxu0 %v1944
    %2692 = vmatprep.subr.bf16.mxu0 0
    %2693 = vmatpush1.bf16.msra.mxu0 %v1949
    %2694 = vmatprep.subr.bf16.mxu0 0
    %2695 = vmatpush1.bf16.msra.mxu0 0
    %2696 = vmatprep.subr.bf16.mxu0 0
    %2697 = vmatpush1.bf16.msra.mxu0 0
    %2698 = vmatprep.subr.bf16.mxu0 0
    %2699 = vmatpush1.bf16.msra.mxu0 0
    %2700 = vmatprep.subr.bf16.mxu0 0
    %2701 = vmatpush1.bf16.msra.mxu0 0
    %2702 = vmatprep.subr.bf16.mxu0 0
    %2703 = vmatpush1.bf16.msra.mxu0 0
    %2704 = vmatprep.subr.bf16.mxu0 0
    %2705 = vmatpush1.bf16.msra.mxu0 0
    %2706 = vmatprep.subr.bf16.mxu0 0
    %2707 = vmatpush1.bf16.msra.mxu0 0
    %2708 = vmatprep.subr.bf16.mxu0 0
    %2709 = vmatpush1.bf16.msra.mxu0 0
    %2710 = vmatprep.mubr.bf16.mxu0 0
    %2711 = vmatmul.mubr.bf16.gmra.mrb[0].mxu0 %v410
    %v2712 = vpop.f32.mrb[0].mxu0
    %v2713 = vadd.f32 %v2673, %v2712
    %v2714 = vpop.f32.mrb[0].mxu0
    %v2715 = vpop.f32.mrb[0].mxu0
    %v2716 = vpop.f32.mrb[0].mxu0
    %2717 = vdwg.mxu0
    %v2718 = vmax.f32 %v2388, 0.0
    %v2719 = vmax.f32 %v2390, 0.0
    %v2720 = vmax.f32 %v2552, 0.0
    %v2721 = vmax.f32 %v2554, 0.0
    %v2722 = vmax.f32 %v2713, 0.0
    %v2723 = vpack.c.bf16 %v2718, %v2718
    %v2724 = vpack.c.bf16 %v2719, %v2719
    %v2725 = vpack.c.bf16 %v2720, %v2720
    %v2726 = vpack.c.bf16 %v2721, %v2721
    %v2727 = vpack.c.bf16 %v2722, %v2722
    %v2728 = vld [vmem:[#allocation9] sm:$0xf]
    %v2729 = vld [vmem:[#allocation9 + $0x4] sm:$0xf]
    %v2730 = vld [vmem:[#allocation9 + $0x8] sm:$0xf]
    %v2731 = vld [vmem:[#allocation9 + $0xc] sm:$0xf]
    %v2732 = vld [vmem:[#allocation9 + $0x10] sm:$0xf]
    %v2733 = vld [vmem:[#allocation9 + $0x14] sm:$0xf]
    %v2734 = vld [vmem:[#allocation9 + $0x18] sm:$0xf]
    %v2735 = vld [vmem:[#allocation9 + $0x1c] sm:$0xf]
    %v2736 = vld [vmem:[#allocation9 + $0x20] sm:$0xf]
    %v2737 = vld [vmem:[#allocation9 + $0x24] sm:$0xf]
    %v2738 = vld [vmem:[#allocation9 + $0x28] sm:$0xf]
    %v2739 = vld [vmem:[#allocation9 + $0x2c] sm:$0xf]
    %v2740 = vld [vmem:[#allocation9 + $0x30] sm:$0xf]
    %v2741 = vld [vmem:[#allocation9 + $0x34] sm:$0xf]
    %v2742 = vld [vmem:[#allocation9 + $0x38] sm:$0xf]
    %v2743 = vld [vmem:[#allocation9 + $0x3c] sm:$0xf]
    %v2744 = vld [vmem:[#allocation9 + $0x40] sm:$0xf]
    %v2745 = vld [vmem:[#allocation9 + $0x44] sm:$0xf]
    %v2746 = vld [vmem:[#allocation9 + $0x48] sm:$0xf]
    %v2747 = vld [vmem:[#allocation9 + $0x4c] sm:$0xf]
    %v2748 = vld [vmem:[#allocation9 + $0x50] sm:$0xf]
    %v2749 = vld [vmem:[#allocation9 + $0x54] sm:$0xf]
    %v2750 = vld [vmem:[#allocation9 + $0x58] sm:$0xf]
    %v2751 = vld [vmem:[#allocation9 + $0x5c] sm:$0xf]
    %v2752 = vld [vmem:[#allocation9 + $0x60] sm:$0xf]
    %v2753 = vld [vmem:[#allocation9 + $0x64] sm:$0xf]
    %v2754 = vld [vmem:[#allocation9 + $0x68] sm:$0xf]
    %v2755 = vld [vmem:[#allocation9 + $0x6c] sm:$0xf]
    %v2756 = vld [vmem:[#allocation9 + $0x70] sm:$0xf]
    %v2757 = vld [vmem:[#allocation9 + $0x74] sm:$0xf]
    %v2758 = vld [vmem:[#allocation9 + $0x78] sm:$0xf]
    %v2759 = vld [vmem:[#allocation9 + $0x7c] sm:$0xf]
    %v2760 = vld [vmem:[#allocation9 + $0x80] sm:$0xf]
    %v2761 = vld [vmem:[#allocation9 + $0x84] sm:$0xf]
    %v2762 = vld [vmem:[#allocation9 + $0x88] sm:$0xf]
    %v2763 = vld [vmem:[#allocation9 + $0x8c] sm:$0xf]
    %v2764 = vld [vmem:[#allocation9 + $0x90] sm:$0xf]
    %v2765 = vld [vmem:[#allocation9 + $0x94] sm:$0xf]
    %v2766 = vld [vmem:[#allocation9 + $0x98] sm:$0xf]
    %v2767 = vld [vmem:[#allocation9 + $0x9c] sm:$0xf]
    %v2768 = vld [vmem:[#allocation9 + $0xa0] sm:$0xf]
    %v2769 = vld [vmem:[#allocation9 + $0xa4] sm:$0xf]
    %v2770 = vld [vmem:[#allocation9 + $0xa8] sm:$0xf]
    %v2771 = vld [vmem:[#allocation9 + $0xac] sm:$0xf]
    %v2772 = vld [vmem:[#allocation9 + $0xb0] sm:$0xf]
    %v2773 = vld [vmem:[#allocation9 + $0xb4] sm:$0xf]
    %v2774 = vld [vmem:[#allocation9 + $0xb8] sm:$0xf]
    %v2775 = vld [vmem:[#allocation9 + $0xbc] sm:$0xf]
    %v2776 = vld [vmem:[#allocation9 + $0xc0] sm:$0xf]
    %v2777 = vld [vmem:[#allocation9 + $0xc4] sm:$0xf]
    %v2778 = vld [vmem:[#allocation9 + $0xc8] sm:$0xf]
    %v2779 = vld [vmem:[#allocation9 + $0xcc] sm:$0xf]
    %v2780 = vld [vmem:[#allocation9 + $0xd0] sm:$0xf]
    %v2781 = vld [vmem:[#allocation9 + $0xd4] sm:$0xf]
    %v2782 = vld [vmem:[#allocation9 + $0xd8] sm:$0xf]
    %v2783 = vld [vmem:[#allocation9 + $0xdc] sm:$0xf]
    %v2784 = vld [vmem:[#allocation9 + $0xe0] sm:$0xf]
    %v2785 = vld [vmem:[#allocation9 + $0xe4] sm:$0xf]
    %v2786 = vld [vmem:[#allocation9 + $0xe8] sm:$0xf]
    %v2787 = vld [vmem:[#allocation9 + $0xec] sm:$0xf]
    %v2788 = vld [vmem:[#allocation9 + $0xf0] sm:$0xf]
    %v2789 = vld [vmem:[#allocation9 + $0xf4] sm:$0xf]
    %v2790 = vld [vmem:[#allocation9 + $0xf8] sm:$0xf]
    %v2791 = vld [vmem:[#allocation9 + $0xfc] sm:$0xf]
    %v2792 = vld [vmem:[#allocation9 + $0x100] sm:$0xf]
    %v2793 = vld [vmem:[#allocation9 + $0x104] sm:$0xf]
    %v2794 = vld [vmem:[#allocation9 + $0x108] sm:$0xf]
    %v2795 = vld [vmem:[#allocation9 + $0x10c] sm:$0xf]
    %v2796 = vld [vmem:[#allocation9 + $0x110] sm:$0xf]
    %v2797 = vld [vmem:[#allocation9 + $0x114] sm:$0xf]
    %v2798 = vld [vmem:[#allocation9 + $0x118] sm:$0xf]
    %v2799 = vld [vmem:[#allocation9 + $0x11c] sm:$0xf]
    %v2800 = vld [vmem:[#allocation9 + $0x120] sm:$0xf]
    %v2801 = vld [vmem:[#allocation9 + $0x124] sm:$0xf]
    %v2802 = vld [vmem:[#allocation9 + $0x128] sm:$0xf]
    %v2803 = vld [vmem:[#allocation9 + $0x12c] sm:$0xf]
    %v2804 = vld [vmem:[#allocation9 + $0x130] sm:$0xf]
    %v2805 = vld [vmem:[#allocation9 + $0x134] sm:$0xf]
    %v2806 = vld [vmem:[#allocation9 + $0x138] sm:$0xf]
    %v2807 = vld [vmem:[#allocation9 + $0x13c] sm:$0xf]
    %v2808 = vld [vmem:[#allocation10] sm:$0x1]
    %v2810 = vlaneseq
    %v2811 = vshrl.u32 %v2810, 7
    %v2812 = vsub.s32 0, %v2811
    %v2813 = vrot.slane %v2808, %v2812
    %v2895 = vunpack.c.l.b16 %v2728
    %v2896 = vunpack.c.l.b16 %v2729
    %v2897 = vunpack.c.l.b16 %v2730
    %v2898 = vunpack.c.l.b16 %v2731
    %v2899 = vunpack.c.l.b16 %v2732
    %v2900 = vunpack.c.l.b16 %v2733
    %v2901 = vunpack.c.l.b16 %v2734
    %v2902 = vunpack.c.l.b16 %v2735
    %v2903 = vunpack.c.l.b16 %v2736
    %v2904 = vunpack.c.l.b16 %v2737
    %v2905 = vunpack.c.l.b16 %v2738
    %v2906 = vunpack.c.l.b16 %v2739
    %v2907 = vunpack.c.l.b16 %v2740
    %v2908 = vunpack.c.l.b16 %v2741
    %v2909 = vunpack.c.l.b16 %v2742
    %v2910 = vunpack.c.l.b16 %v2743
    %v2911 = vunpack.c.l.b16 %v2744
    %v2912 = vunpack.c.l.b16 %v2745
    %v2913 = vunpack.c.l.b16 %v2746
    %v2914 = vunpack.c.l.b16 %v2747
    %v2915 = vunpack.c.l.b16 %v2748
    %v2916 = vunpack.c.l.b16 %v2749
    %v2917 = vunpack.c.l.b16 %v2750
    %v2918 = vunpack.c.l.b16 %v2751
    %v2919 = vunpack.c.l.b16 %v2752
    %v2920 = vunpack.c.l.b16 %v2753
    %v2921 = vunpack.c.l.b16 %v2754
    %v2922 = vunpack.c.l.b16 %v2755
    %v2923 = vunpack.c.l.b16 %v2756
    %v2924 = vunpack.c.l.b16 %v2757
    %v2925 = vunpack.c.l.b16 %v2758
    %v2926 = vunpack.c.l.b16 %v2759
    %v2927 = vunpack.c.l.b16 %v2760
    %v2928 = vunpack.c.l.b16 %v2761
    %v2929 = vunpack.c.l.b16 %v2762
    %v2930 = vunpack.c.l.b16 %v2763
    %v2931 = vunpack.c.l.b16 %v2764
    %v2932 = vunpack.c.l.b16 %v2765
    %v2933 = vunpack.c.l.b16 %v2766
    %v2934 = vunpack.c.l.b16 %v2767
    %v2935 = vunpack.c.l.b16 %v2768
    %v2936 = vunpack.c.l.b16 %v2769
    %v2937 = vunpack.c.l.b16 %v2770
    %v2938 = vunpack.c.l.b16 %v2771
    %v2939 = vunpack.c.l.b16 %v2772
    %v2940 = vunpack.c.l.b16 %v2773
    %v2941 = vunpack.c.l.b16 %v2774
    %v2942 = vunpack.c.l.b16 %v2775
    %v2943 = vunpack.c.l.b16 %v2776
    %v2944 = vunpack.c.l.b16 %v2777
    %v2945 = vunpack.c.l.b16 %v2778
    %v2946 = vunpack.c.l.b16 %v2779
    %v2947 = vunpack.c.l.b16 %v2780
    %v2948 = vunpack.c.l.b16 %v2781
    %v2949 = vunpack.c.l.b16 %v2782
    %v2950 = vunpack.c.l.b16 %v2783
    %v2951 = vunpack.c.l.b16 %v2784
    %v2952 = vunpack.c.l.b16 %v2785
    %v2953 = vunpack.c.l.b16 %v2786
    %v2954 = vunpack.c.l.b16 %v2787
    %v2955 = vunpack.c.l.b16 %v2788
    %v2956 = vunpack.c.l.b16 %v2789
    %v2957 = vunpack.c.l.b16 %v2790
    %v2958 = vunpack.c.l.b16 %v2791
    %v2959 = vunpack.c.l.b16 %v2792
    %v2960 = vunpack.c.l.b16 %v2793
    %v2961 = vunpack.c.l.b16 %v2794
    %v2962 = vunpack.c.l.b16 %v2795
    %v2963 = vunpack.c.l.b16 %v2796
    %v2964 = vunpack.c.l.b16 %v2797
    %v2965 = vunpack.c.l.b16 %v2798
    %v2966 = vunpack.c.l.b16 %v2799
    %v2967 = vunpack.c.l.b16 %v2800
    %v2968 = vunpack.c.l.b16 %v2801
    %v2969 = vunpack.c.l.b16 %v2802
    %v2970 = vunpack.c.l.b16 %v2803
    %v2971 = vunpack.c.l.b16 %v2804
    %v2972 = vunpack.c.l.b16 %v2805
    %v2973 = vunpack.c.l.b16 %v2806
    %v2974 = vunpack.c.l.b16 %v2807
    %v2975 = vpack.c.b16 %v2896, %v2895
    %v2976 = vpack.c.b16 %v2898, %v2897
    %v2977 = vpack.c.b16 %v2900, %v2899
    %v2978 = vpack.c.b16 %v2902, %v2901
    %v2979 = vpack.c.b16 %v2904, %v2903
    %v2980 = vpack.c.b16 %v2906, %v2905
    %v2981 = vpack.c.b16 %v2908, %v2907
    %v2982 = vpack.c.b16 %v2910, %v2909
    %v2983 = vpack.c.b16 %v2912, %v2911
    %v2984 = vpack.c.b16 %v2914, %v2913
    %v2985 = vpack.c.b16 %v2916, %v2915
    %v2986 = vpack.c.b16 %v2918, %v2917
    %v2987 = vpack.c.b16 %v2920, %v2919
    %v2988 = vpack.c.b16 %v2922, %v2921
    %v2989 = vpack.c.b16 %v2924, %v2923
    %v2990 = vpack.c.b16 %v2926, %v2925
    %v2991 = vpack.c.b16 %v2928, %v2927
    %v2992 = vpack.c.b16 %v2930, %v2929
    %v2993 = vpack.c.b16 %v2932, %v2931
    %v2994 = vpack.c.b16 %v2934, %v2933
    %v2995 = vpack.c.b16 %v2936, %v2935
    %v2996 = vpack.c.b16 %v2938, %v2937
    %v2997 = vpack.c.b16 %v2940, %v2939
    %v2998 = vpack.c.b16 %v2942, %v2941
    %v2999 = vpack.c.b16 %v2944, %v2943
    %v3000 = vpack.c.b16 %v2946, %v2945
    %v3001 = vpack.c.b16 %v2948, %v2947
    %v3002 = vpack.c.b16 %v2950, %v2949
    %v3003 = vpack.c.b16 %v2952, %v2951
    %v3004 = vpack.c.b16 %v2954, %v2953
    %v3005 = vpack.c.b16 %v2956, %v2955
    %v3006 = vpack.c.b16 %v2958, %v2957
    %v3007 = vpack.c.b16 %v2960, %v2959
    %v3008 = vpack.c.b16 %v2962, %v2961
    %v3009 = vpack.c.b16 %v2964, %v2963
    %v3010 = vpack.c.b16 %v2966, %v2965
    %v3011 = vpack.c.b16 %v2968, %v2967
    %v3012 = vpack.c.b16 %v2970, %v2969
    %v3013 = vpack.c.b16 %v2972, %v2971
    %v3014 = vpack.c.b16 %v2974, %v2973
    %3055 = vmatprep.subr.bf16.mxu0 0
    %3056 = vmatpush1.bf16.msra.mxu0 %v2975
    %3057 = vmatprep.subr.bf16.mxu0 0
    %3058 = vmatpush1.bf16.msra.mxu0 %v2976
    %3059 = vmatprep.subr.bf16.mxu0 0
    %3060 = vmatpush1.bf16.msra.mxu0 %v2977
    %3061 = vmatprep.subr.bf16.mxu0 0
    %3062 = vmatpush1.bf16.msra.mxu0 %v2978
    %3063 = vmatprep.subr.bf16.mxu0 0
    %3064 = vmatpush1.bf16.msra.mxu0 %v2979
    %3065 = vmatprep.subr.bf16.mxu0 0
    %3066 = vmatpush1.bf16.msra.mxu0 %v2980
    %3067 = vmatprep.subr.bf16.mxu0 0
    %3068 = vmatpush1.bf16.msra.mxu0 %v2981
    %3069 = vmatprep.subr.bf16.mxu0 0
    %3070 = vmatpush1.bf16.msra.mxu0 %v2982
    %3071 = vmatprep.subr.bf16.mxu0 0
    %3072 = vmatpush1.bf16.msra.mxu0 %v2983
    %3073 = vmatprep.subr.bf16.mxu0 0
    %3074 = vmatpush1.bf16.msra.mxu0 %v2984
    %3075 = vmatprep.subr.bf16.mxu0 0
    %3076 = vmatpush1.bf16.msra.mxu0 %v2985
    %3077 = vmatprep.subr.bf16.mxu0 0
    %3078 = vmatpush1.bf16.msra.mxu0 %v2986
    %3079 = vmatprep.subr.bf16.mxu0 0
    %3080 = vmatpush1.bf16.msra.mxu0 %v2987
    %3081 = vmatprep.subr.bf16.mxu0 0
    %3082 = vmatpush1.bf16.msra.mxu0 %v2988
    %3083 = vmatprep.subr.bf16.mxu0 0
    %3084 = vmatpush1.bf16.msra.mxu0 %v2989
    %3085 = vmatprep.subr.bf16.mxu0 0
    %3086 = vmatpush1.bf16.msra.mxu0 %v2990
    %3087 = vmatprep.mubr.bf16.mxu0 %v2724
    %3088 = vmatmul.mubr.bf16.gmra.mrb[0].mxu0 %v2723
    %v3089 = vpop.f32.mrb[0].mxu0
    %v3090 = vadd.f32 %v2813, %v3089
    %v3091 = vpop.f32.mrb[0].mxu0
    %v3092 = vpop.f32.mrb[0].mxu0
    %v3093 = vpop.f32.mrb[0].mxu0
    %3094 = vdwg.mxu0
    %3095 = vmatprep.subr.bf16.mxu0 0
    %3096 = vmatpush1.bf16.msra.mxu0 %v2991
    %3097 = vmatprep.subr.bf16.mxu0 0
    %3098 = vmatpush1.bf16.msra.mxu0 %v2992
    %3099 = vmatprep.subr.bf16.mxu0 0
    %3100 = vmatpush1.bf16.msra.mxu0 %v2993
    %3101 = vmatprep.subr.bf16.mxu0 0
    %3102 = vmatpush1.bf16.msra.mxu0 %v2994
    %3103 = vmatprep.subr.bf16.mxu0 0
    %3104 = vmatpush1.bf16.msra.mxu0 %v2995
    %3105 = vmatprep.subr.bf16.mxu0 0
    %3106 = vmatpush1.bf16.msra.mxu0 %v2996
    %3107 = vmatprep.subr.bf16.mxu0 0
    %3108 = vmatpush1.bf16.msra.mxu0 %v2997
    %3109 = vmatprep.subr.bf16.mxu0 0
    %3110 = vmatpush1.bf16.msra.mxu0 %v2998
    %3111 = vmatprep.subr.bf16.mxu0 0
    %3112 = vmatpush1.bf16.msra.mxu0 %v2999
    %3113 = vmatprep.subr.bf16.mxu0 0
    %3114 = vmatpush1.bf16.msra.mxu0 %v3000
    %3115 = vmatprep.subr.bf16.mxu0 0
    %3116 = vmatpush1.bf16.msra.mxu0 %v3001
    %3117 = vmatprep.subr.bf16.mxu0 0
    %3118 = vmatpush1.bf16.msra.mxu0 %v3002
    %3119 = vmatprep.subr.bf16.mxu0 0
    %3120 = vmatpush1.bf16.msra.mxu0 %v3003
    %3121 = vmatprep.subr.bf16.mxu0 0
    %3122 = vmatpush1.bf16.msra.mxu0 %v3004
    %3123 = vmatprep.subr.bf16.mxu0 0
    %3124 = vmatpush1.bf16.msra.mxu0 %v3005
    %3125 = vmatprep.subr.bf16.mxu0 0
    %3126 = vmatpush1.bf16.msra.mxu0 %v3006
    %3127 = vmatprep.mubr.bf16.mxu0 %v2726
    %3128 = vmatmul.mubr.bf16.gmra.mrb[0].mxu0 %v2725
    %v3129 = vpop.f32.mrb[0].mxu0
    %v3130 = vadd.f32 %v3090, %v3129
    %v3131 = vpop.f32.mrb[0].mxu0
    %v3132 = vpop.f32.mrb[0].mxu0
    %v3133 = vpop.f32.mrb[0].mxu0
    %3134 = vdwg.mxu0
    %3135 = vmatprep.subr.bf16.mxu0 0
    %3136 = vmatpush1.bf16.msra.mxu0 %v3007
    %3137 = vmatprep.subr.bf16.mxu0 0
    %3138 = vmatpush1.bf16.msra.mxu0 %v3008
    %3139 = vmatprep.subr.bf16.mxu0 0
    %3140 = vmatpush1.bf16.msra.mxu0 %v3009
    %3141 = vmatprep.subr.bf16.mxu0 0
    %3142 = vmatpush1.bf16.msra.mxu0 %v3010
    %3143 = vmatprep.subr.bf16.mxu0 0
    %3144 = vmatpush1.bf16.msra.mxu0 %v3011
    %3145 = vmatprep.subr.bf16.mxu0 0
    %3146 = vmatpush1.bf16.msra.mxu0 %v3012
    %3147 = vmatprep.subr.bf16.mxu0 0
    %3148 = vmatpush1.bf16.msra.mxu0 %v3013
    %3149 = vmatprep.subr.bf16.mxu0 0
    %3150 = vmatpush1.bf16.msra.mxu0 %v3014
    %3151 = vmatprep.subr.bf16.mxu0 0
    %3152 = vmatpush1.bf16.msra.mxu0 0
    %3153 = vmatprep.subr.bf16.mxu0 0
    %3154 = vmatpush1.bf16.msra.mxu0 0
    %3155 = vmatprep.subr.bf16.mxu0 0
    %3156 = vmatpush1.bf16.msra.mxu0 0
    %3157 = vmatprep.subr.bf16.mxu0 0
    %3158 = vmatpush1.bf16.msra.mxu0 0
    %3159 = vmatprep.subr.bf16.mxu0 0
    %3160 = vmatpush1.bf16.msra.mxu0 0
    %3161 = vmatprep.subr.bf16.mxu0 0
    %3162 = vmatpush1.bf16.msra.mxu0 0
    %3163 = vmatprep.subr.bf16.mxu0 0
    %3164 = vmatpush1.bf16.msra.mxu0 0
    %3165 = vmatprep.subr.bf16.mxu0 0
    %3166 = vmatpush1.bf16.msra.mxu0 0
    %3167 = vmatprep.mubr.bf16.mxu0 0
    %3168 = vmatmul.mubr.bf16.gmra.mrb[0].mxu0 %v2727
    %v3169 = vpop.f32.mrb[0].mxu0
    %v3170 = vadd.f32 %v3130, %v3169
    %v3171 = vpop.f32.mrb[0].mxu0
    %v3172 = vpop.f32.mrb[0].mxu0
    %v3173 = vpop.f32.mrb[0].mxu0
    %3174 = vdwg.mxu0
    %v3175 = vtanh.pop %v3170
    %3176 = vst [vmem:[%s7] sm:$0xff] %v3175
    // Predicated region
    $region54: #{actor_forward.1} parent=1 // pred_check
      _
    $region55: #{actor_forward.1} parent=1 // pred_check_branch
      %3178 = sbr.rel (0) target = $region57
    $region56: #{actor_forward.1} parent=1 // pred_region
      _
    $region57: #{actor_forward.1} parent=1 // pred_fallthru
      _
    // Predicated region
    $region58: #{actor_forward.1} parent=1 // pred_check
      _
    $region59: #{actor_forward.1} parent=1 // pred_check_branch
      %3180 = sbr.rel (0) target = $region61
    $region60: #{actor_forward.1} parent=1 // pred_region
      _
    $region61: #{actor_forward.1} parent=1 // pred_fallthru
      _
    %3181 = vsyncpa [#allocation3], 1
    %3182 = vsyncpa [#allocation5], 1
    %3183 = vsyncpa [#allocation8], 1
    %3184 = vsyncpa [#allocation11], 1

</llo_original>
